<compile_context>
chip_gen: v7x
topology: tpu7x:2x2x1
jax: 0.10.0
libtpu: 0.0.40
codegen_flags: <defaults>
</compile_context>

<pallas_src>
import jax
import jax.numpy as jnp
from jax.experimental import pallas as pl
from jax.experimental.pallas import tpu as pltpu

BN_EPS = 1e-5
VMEM_LIMIT = 32 * 1024 * 1024   # explicit scoped-VMEM budget (safe on v5e/v6e/v7x)


# ---------------------------------------------------------------------------
# Tiling helpers
# ---------------------------------------------------------------------------
def _pick_tm(M, tm_max=512):
    """Row tile: as large as possible (<= tm_max), multiple of 8, and prefer
    >= 2 grid steps so the parallel grid axis can shard across TensorCores."""
    if M > tm_max:
        return tm_max
    if M % 2 == 0 and (M // 2) % 8 == 0:
        return M // 2
    return M          # single full-extent block (no (8,128) constraint then)


def _pick_tn(cout, tn_max=256):
    """Output-channel tile: full width when small, else lane-dense 256/128."""
    if cout <= tn_max:
        return cout
    if cout % 256 == 0:
        return 256
    if cout % 128 == 0:
        return 128
    return cout


def _pad_rows(a, mp):
    m = a.shape[0]
    if mp == m:
        return a
    return jnp.pad(a, ((0, mp - m),) + ((0, 0),) * (a.ndim - 1))


# ---------------------------------------------------------------------------
# Kernel 1: dense fused  out = act(x @ w + b)      (conv1 + BN1 + ReLU)
# ---------------------------------------------------------------------------
def _dense_kernel(apply_relu):
    def kernel(x_ref, w_ref, b_ref, o_ref):
        y = jnp.dot(x_ref[...], w_ref[...], preferred_element_type=jnp.float32)
        y = y + b_ref[...]
        if apply_relu:
            y = jnp.maximum(y, 0.0)
        o_ref[...] = y.astype(o_ref.dtype)
    return kernel


def matmul_bias_act(x, w, b, *, apply_relu, out_dtype, tm_max=512):
    M, K = x.shape
    cout = w.shape[1]
    tm = _pick_tm(M, tm_max)
    tn = _pick_tn(cout)
    Mp = pl.cdiv(M, tm) * tm
    xp = _pad_rows(x, Mp)
    out = pl.pallas_call(
        _dense_kernel(apply_relu),
        out_shape=jax.ShapeDtypeStruct((Mp, cout), out_dtype),
        grid=(Mp // tm, cout // tn),
        in_specs=[
            pl.BlockSpec((tm, K), lambda i, j: (i, 0)),
            # grid-invariant along i -> not re-fetched between row tiles
            pl.BlockSpec((K, tn), lambda i, j: (0, j)),
            pl.BlockSpec((1, tn), lambda i, j: (0, j)),
        ],
        out_specs=pl.BlockSpec((tm, tn), lambda i, j: (i, j)),
        compiler_params=pltpu.CompilerParams(
            dimension_semantics=("parallel", "parallel"),
            vmem_limit_bytes=VMEM_LIMIT),
    )(xp, w, b)
    return out if Mp == M else out[:M]


# ---------------------------------------------------------------------------
# Kernel 2: grouped 3x3 conv as true per-group matmuls  (conv2 + BN2 + ReLU)
# ---------------------------------------------------------------------------
def _grouped_kernel(groups, kdim, wo):
    def kernel(x_ref, w_ref, b_ref, o_ref):
        x = x_ref[...]                      # (tm, groups*kdim)  bf16
        w = w_ref[...]                      # (kdim, groups*wo)  bf16
        outs = []
        for g in range(groups):             # static unroll -> no zero FLOPs
            xg = x[:, g * kdim:(g + 1) * kdim]
            wg = w[:, g * wo:(g + 1) * wo]
            outs.append(jnp.dot(xg, wg, preferred_element_type=jnp.float32))
        y = jnp.concatenate(outs, axis=-1) + b_ref[...]
        y = jnp.maximum(y, 0.0)
        o_ref[...] = y.astype(o_ref.dtype)
    return kernel


def grouped_matmul_bias_relu(patches, w, b, groups, *, out_dtype, tm_max=512):
    M, KG = patches.shape
    kdim, GW = w.shape                      # kdim = 9*wi, GW = groups*wo
    wo = GW // groups
    assert KG == groups * kdim
    tm = _pick_tm(M, tm_max)
    Mp = pl.cdiv(M, tm) * tm
    xp = _pad_rows(patches, Mp)
    out = pl.pallas_call(
        _grouped_kernel(groups, kdim, wo),
        out_shape=jax.ShapeDtypeStruct((Mp, GW), out_dtype),
        grid=(Mp // tm,),
        in_specs=[
            pl.BlockSpec((tm, KG), lambda i: (i, 0)),
            pl.BlockSpec((kdim, GW), lambda i: (0, 0)),
            pl.BlockSpec((1, GW), lambda i: (0, 0)),
        ],
        out_specs=pl.BlockSpec((tm, GW), lambda i: (i, 0)),
        compiler_params=pltpu.CompilerParams(
            dimension_semantics=("parallel",),
            vmem_limit_bytes=VMEM_LIMIT),
    )(xp, w, b)
    return out if Mp == M else out[:M]


# ---------------------------------------------------------------------------
# Kernel 3: conv3 + BN3 + shortcut (projection or identity) + add + ReLU
# ---------------------------------------------------------------------------
def _conv3_proj_kernel(a_ref, w3_ref, b3_ref, xs_ref, ws_ref, bs_ref, o_ref):
    y = jnp.dot(a_ref[...], w3_ref[...], preferred_element_type=jnp.float32) + b3_ref[...]
    y = y + jnp.dot(xs_ref[...], ws_ref[...], preferred_element_type=jnp.float32) + bs_ref[...]
    o_ref[...] = jnp.maximum(y, 0.0).astype(o_ref.dtype)


def _conv3_identity_kernel(a_ref, w3_ref, b3_ref, r_ref, o_ref):
    y = jnp.dot(a_ref[...], w3_ref[...], preferred_element_type=jnp.float32) + b3_ref[...]
    y = y + r_ref[...].astype(jnp.float32)
    o_ref[...] = jnp.maximum(y, 0.0).astype(o_ref.dtype)


def conv3_shortcut_fused(a, w3, b3, xs, ws=None, bs=None, *,
                         out_dtype=jnp.float32, tm_max=512):
    M, K3 = a.shape
    cout = w3.shape[1]
    tm = _pick_tm(M, tm_max)
    tn = _pick_tn(cout)
    Mp = pl.cdiv(M, tm) * tm
    ap = _pad_rows(a, Mp)
    xsp = _pad_rows(xs, Mp)
    if ws is not None:
        Ks = xs.shape[1]
        kernel = _conv3_proj_kernel
        in_specs = [
            pl.BlockSpec((tm, K3), lambda i, j: (i, 0)),
            pl.BlockSpec((K3, tn), lambda i, j: (0, j)),
            pl.BlockSpec((1, tn), lambda i, j: (0, j)),
            pl.BlockSpec((tm, Ks), lambda i, j: (i, 0)),
            pl.BlockSpec((Ks, tn), lambda i, j: (0, j)),
            pl.BlockSpec((1, tn), lambda i, j: (0, j)),
        ]
        args = (ap, w3, b3, xsp, ws, bs)
    else:
        assert xs.shape[1] == cout, \
            "identity shortcut requires in_planes == expansion * group_width"
        kernel = _conv3_identity_kernel
        in_specs = [
            pl.BlockSpec((tm, K3), lambda i, j: (i, 0)),
            pl.BlockSpec((K3, tn), lambda i, j: (0, j)),
            pl.BlockSpec((1, tn), lambda i, j: (0, j)),
            pl.BlockSpec((tm, tn), lambda i, j: (i, j)),
        ]
        args = (ap, w3, b3, xsp)
    out = pl.pallas_call(
        kernel,
        out_shape=jax.ShapeDtypeStruct((Mp, cout), out_dtype),
        grid=(Mp // tm, cout // tn),
        in_specs=in_specs,
        out_specs=pl.BlockSpec((tm, tn), lambda i, j: (i, j)),
        compiler_params=pltpu.CompilerParams(
            dimension_semantics=("parallel", "parallel"),
            vmem_limit_bytes=VMEM_LIMIT),
    )(*args)
    return out if Mp == M else out[:M]


# ---------------------------------------------------------------------------
# Glue: BN folding, group-major patches, grouped-weight layout
# ---------------------------------------------------------------------------
def fold_bn(gamma, beta, mean, var, eps=BN_EPS):
    scale = gamma / jnp.sqrt(var + eps)
    bias = beta - mean * scale
    return scale, bias


def build_group_patches(x, groups, stride):
    """x: (N, H, W, GW) -> (N*Ho*Wo, groups*9*wi) group-major bf16 patches.
    Per-group feature order is (kh, kw, i) to match grouped_w2_matrix."""
    N, H, W, GW = x.shape
    wi = GW // groups
    xp = jnp.pad(x, ((0, 0), (1, 1), (1, 1), (0, 0)))
    Ho = (H + 2 - 3) // stride + 1
    Wo = (W + 2 - 3) // stride + 1
    taps = []
    for kh in range(3):
        for kw in range(3):
            taps.append(xp[:, kh:kh + (Ho - 1) * stride + 1:stride,
                              kw:kw + (Wo - 1) * stride + 1:stride, :])
    p = jnp.stack(taps, axis=3)                        # (N, Ho, Wo, 9, GW)
    p = p.reshape(N, Ho, Wo, 9, groups, wi)
    p = jnp.transpose(p, (0, 1, 2, 4, 3, 5))           # (N, Ho, Wo, G, 9, wi)
    return p.reshape(N * Ho * Wo, groups * 9 * wi), Ho, Wo


def grouped_w2_matrix(w_oihw, groups):
    """PyTorch grouped weight (G*wo, wi, 3, 3) -> dense (9*wi, G*wo); column
    g*wo+o holds group g's filter for output o (no block-diagonal zeros)."""
    cout, wi, KH, KW = w_oihw.shape
    wo = cout // groups
    w = w_oihw.reshape(groups, wo, wi, KH, KW)
    w = jnp.transpose(w, (3, 4, 2, 0, 1))              # (KH, KW, wi, G, wo)
    return w.reshape(KH * KW * wi, groups * wo)


# ---------------------------------------------------------------------------
# Block forward (Pallas)
# ---------------------------------------------------------------------------
def block_forward(x, p, cardinality, stride):
    """x: (N, H, W, Cin) float32 NHWC -> (N, Ho, Wo, Cexp) float32."""
    N, H, W, Cin = x.shape
    GW = p["w1"].shape[1]
    Cexp = p["w3"].shape[1]
    xb = x.astype(jnp.bfloat16)                         # bf16 MXU inputs

    # conv1 (1x1) + bn1 + relu
    out = matmul_bias_act(xb.reshape(-1, Cin), p["w1"], p["b1"],
                          apply_relu=True, out_dtype=jnp.bfloat16)
    out = out.reshape(N, H, W, GW)

    # conv2 (grouped 3x3, stride) + bn2 + relu  (true grouped matmul)
    patches, Ho, Wo = build_group_patches(out, cardinality, stride)
    out = grouped_matmul_bias_relu(patches, p["w2"], p["b2"], cardinality,
                                   out_dtype=jnp.bfloat16)

    # conv3 (1x1) + bn3 + shortcut + residual add + relu (single fused kernel)
    xs = xb[:, ::stride, ::stride, :].reshape(-1, Cin)
    out = conv3_shortcut_fused(out, p["w3"], p["b3"], xs,
                               p.get("ws"), p.get("bs"))
    return out.reshape(N, Ho, Wo, Cexp)


# ---------------------------------------------------------------------------
# Parameter init (torch-shaped) + conversion to kernel form
# ---------------------------------------------------------------------------
def init_torch_params(key, in_planes, cardinality, width, stride):
    GW = cardinality * width
    exp = 2
    ks = jax.random.split(key, 8)

    def w(k, shape, std=0.1):
        return std * jax.random.normal(k, shape, jnp.float32)

    def bn(k, c):
        k1, k2, k3, k4 = jax.random.split(k, 4)
        return (0.5 + jax.random.uniform(k1, (c,), jnp.float32),
                0.1 * jax.random.normal(k2, (c,), jnp.float32),
                0.1 * jax.random.normal(k3, (c,), jnp.float32),
                0.5 + jax.random.uniform(k4, (c,), jnp.float32))

    tp = {
        "w1": w(ks[0], (GW, in_planes, 1, 1)), "bn1": bn(ks[1], GW),
        "w2": w(ks[2], (GW, width, 3, 3)),     "bn2": bn(ks[3], GW),
        "w3": w(ks[4], (exp * GW, GW, 1, 1)),  "bn3": bn(ks[5], exp * GW),
    }
    if stride != 1 or in_planes != exp * GW:
        tp["ws"] = w(ks[6], (exp * GW, in_planes, 1, 1))
        tp["bns"] = bn(ks[7], exp * GW)
    return tp


def to_kernel_params(tp, cardinality):
    """Fold eval-mode BN into the weight (scale) + f32 bias, cast W to bf16."""
    def fold(w_mat, bn_tuple):
        s, b = fold_bn(*bn_tuple)
        return (w_mat * s[None, :]).astype(jnp.bfloat16), b.reshape(1, -1)

    p = {}
    p["w1"], p["b1"] = fold(tp["w1"][:, :, 0, 0].T, tp["bn1"])
    p["w2"], p["b2"] = fold(grouped_w2_matrix(tp["w2"], cardinality), tp["bn2"])
    p["w3"], p["b3"] = fold(tp["w3"][:, :, 0, 0].T, tp["bn3"])
    if "ws" in tp:
        p["ws"], p["bs"] = fold(tp["ws"][:, :, 0, 0].T, tp["bns"])
    return p


# ---------------------------------------------------------------------------
# Pure-JAX reference (sanity check of the forward semantics)
# ---------------------------------------------------------------------------
def conv_ref(x, w_oihw, stride, padding, groups=1):
    return jax.lax.conv_general_dilated(
        x, jnp.transpose(w_oihw, (2, 3, 1, 0)),
        window_strides=(stride, stride), padding=padding,
        dimension_numbers=("NHWC", "HWIO", "NHWC"),
        feature_group_count=groups,
        precision=jax.lax.Precision.HIGHEST)


def reference_forward(x, tp, cardinality, stride):
    def bn(y, prm):
        g, b, m, v = prm
        return (y - m) * (g / jnp.sqrt(v + BN_EPS)) + b

    out = jax.nn.relu(bn(conv_ref(x, tp["w1"], 1, "VALID"), tp["bn1"]))
    out = jax.nn.relu(bn(conv_ref(out, tp["w2"], stride, ((1, 1), (1, 1)),
                                  groups=cardinality), tp["bn2"]))
    out = bn(conv_ref(out, tp["w3"], 1, "VALID"), tp["bn3"])
    if "ws" in tp:
        sc = bn(conv_ref(x, tp["ws"], stride, "VALID"), tp["bns"])
    else:
        sc = x[:, ::stride, ::stride, :]
    return jax.nn.relu(out + sc)


# ---------------------------------------------------------------------------
if __name__ == "__main__":
    key = jax.random.PRNGKey(0)
    fwd = jax.jit(block_forward, static_argnums=(2, 3))
    ref = jax.jit(reference_forward, static_argnums=(2, 3))

    configs = [
        # (N, H, W, in_planes, cardinality, width, stride)
        (2, 8, 8, 16, 4, 8, 2),   # strided block -> projection shortcut path
        (2, 8, 8, 64, 4, 8, 1),   # identity shortcut path (Cin == 2*group_width)
    ]
    for idx, (N, H, W, Cin, card, width, stride) in enumerate(configs):
        kx, kp = jax.random.split(jax.random.fold_in(key, idx))
        x = jax.random.normal(kx, (N, H, W, Cin), jnp.float32)   # NHWC
        torch_params = init_torch_params(kp, Cin, card, width, stride)
        kernel_params = to_kernel_params(torch_params, card)

        y = jax.block_until_ready(fwd(x, kernel_params, card, stride))
        y_ref = jax.block_until_ready(ref(x, torch_params, card, stride))

        assert y.shape == y_ref.shape, (y.shape, y_ref.shape)
        max_err = float(jnp.max(jnp.abs(y - y_ref)))
        assert bool(jnp.allclose(y, y_ref, atol=3e-2, rtol=3e-2)), max_err

    print("KERNEL_OK")
</pallas_src>

<mosaic_0001>
module attributes {stable_mosaic.version = 11 : i64} {
  func.func @kernel(%arg0: i32, %arg1: i32, %arg2: memref<64x16xbf16, #tpu.memory_space<vmem>>, %arg3: memref<16x32xbf16, #tpu.memory_space<vmem>>, %arg4: memref<1x32xf32, #tpu.memory_space<vmem>>, %arg5: memref<64x32xbf16, #tpu.memory_space<vmem>>) attributes {dimension_semantics = [#tpu.dimension_semantics<parallel>, #tpu.dimension_semantics<parallel>], iteration_bounds = array<i64: 2, 1>, scalar_prefetch = 0 : i64, scratch_operands = 0 : i64, tpu.core_type = #tpu.core_type<tc>, window_params = [{transform_indices = @transform_0, window_bounds = array<i64: 64, 16>}, {transform_indices = @transform_1, window_bounds = array<i64: 16, 32>}, {transform_indices = @transform_2, window_bounds = array<i64: 1, 32>}, {transform_indices = @transform_3, window_bounds = array<i64: 64, 32>}]} {
    %c0 = arith.constant 0 : index
    %c0_0 = arith.constant 0 : index
    %0 = vector.load %arg2[%c0, %c0_0] : memref<64x16xbf16, #tpu.memory_space<vmem>>, vector<64x16xbf16>
    %c0_1 = arith.constant 0 : index
    %c0_2 = arith.constant 0 : index
    %1 = vector.load %arg3[%c0_1, %c0_2] : memref<16x32xbf16, #tpu.memory_space<vmem>>, vector<16x32xbf16>
    %cst = arith.constant dense<0.000000e+00> : vector<64x32xf32>
    %2 = tpu.matmul %0, %1, %cst {dimension_numbers = #tpu.dot_dimension_numbers<[1], [0], [0], [1], [0, 0, 1, 1], [], []>} : vector<64x16xbf16>, vector<16x32xbf16>, vector<64x32xf32> -> vector<64x32xf32>
    %c0_3 = arith.constant 0 : index
    %c0_4 = arith.constant 0 : index
    %3 = vector.load %arg4[%c0_3, %c0_4] : memref<1x32xf32, #tpu.memory_space<vmem>>, vector<1x32xf32>
    %4 = vector.broadcast %3 : vector<1x32xf32> to vector<64x32xf32>
    %5 = arith.addf %2, %4 : vector<64x32xf32>
    %cst_5 = arith.constant 0.000000e+00 : f32
    %6 = vector.broadcast %cst_5 : f32 to vector<64x32xf32>
    %7 = arith.maximumf %5, %6 : vector<64x32xf32>
    %8 = arith.truncf %7 : vector<64x32xf32> to vector<64x32xbf16>
    %c0_6 = arith.constant 0 : index
    %c0_7 = arith.constant 0 : index
    %9 = vector.load %arg5[%c0_6, %c0_7] : memref<64x32xbf16, #tpu.memory_space<vmem>>, vector<64x32xbf16>
    tpu.vector_store %arg5[%c0_6, %c0_7], %8 {strides = array<i32>} : memref<64x32xbf16, #tpu.memory_space<vmem>>, vector<64x32xbf16>,
    return
  }
  func.func @transform_0(%arg0: i32, %arg1: i32) -> (i32, i32) {
    %c0_i32 = arith.constant 0 : i32
    %c0_i32_0 = arith.constant 0 : i32
    return %arg0, %c0_i32 : i32, i32
  }
  func.func @transform_1(%arg0: i32, %arg1: i32) -> (i32, i32) {
    %c0_i32 = arith.constant 0 : i32
    %c0_i32_0 = arith.constant 0 : i32
    return %c0_i32, %arg1 : i32, i32
  }
  func.func @transform_2(%arg0: i32, %arg1: i32) -> (i32, i32) {
    %c0_i32 = arith.constant 0 : i32
    %c0_i32_0 = arith.constant 0 : i32
    return %c0_i32, %arg1 : i32, i32
  }
  func.func @transform_3(%arg0: i32, %arg1: i32) -> (i32, i32) {
    %c0_i32 = arith.constant 0 : i32
    return %arg0, %arg1 : i32, i32
  }
}

module attributes {stable_mosaic.version = 11 : i64} {
  func.func @kernel(%arg0: i32, %arg1: memref<16x288xbf16, #tpu.memory_space<vmem>>, %arg2: memref<72x32xbf16, #tpu.memory_space<vmem>>, %arg3: memref<1x32xf32, #tpu.memory_space<vmem>>, %arg4: memref<16x32xbf16, #tpu.memory_space<vmem>>) attributes {dimension_semantics = [#tpu.dimension_semantics<parallel>], iteration_bounds = array<i64: 2>, scalar_prefetch = 0 : i64, scratch_operands = 0 : i64, tpu.core_type = #tpu.core_type<tc>, window_params = [{transform_indices = @transform_0, window_bounds = array<i64: 16, 288>}, {pipeline_mode = #tpu.pipeline_mode<synchronous>, transform_indices = @transform_1, window_bounds = array<i64: 72, 32>}, {pipeline_mode = #tpu.pipeline_mode<synchronous>, transform_indices = @transform_2, window_bounds = array<i64: 1, 32>}, {transform_indices = @transform_3, window_bounds = array<i64: 16, 32>}]} {
    %c0 = arith.constant 0 : index
    %c0_0 = arith.constant 0 : index
    %0 = vector.load %arg1[%c0, %c0_0] : memref<16x288xbf16, #tpu.memory_space<vmem>>, vector<16x288xbf16>
    %c0_1 = arith.constant 0 : index
    %c0_2 = arith.constant 0 : index
    %1 = vector.load %arg2[%c0_1, %c0_2] : memref<72x32xbf16, #tpu.memory_space<vmem>>, vector<72x32xbf16>
    %2 = vector.extract_strided_slice %0 {offsets = [0, 0], sizes = [16, 72], strides = [1, 1]} : vector<16x288xbf16> to vector<16x72xbf16>
    %3 = vector.extract_strided_slice %1 {offsets = [0, 0], sizes = [72, 8], strides = [1, 1]} : vector<72x32xbf16> to vector<72x8xbf16>
    %cst = arith.constant dense<0.000000e+00> : vector<16x8xf32>
    %4 = tpu.matmul %2, %3, %cst {dimension_numbers = #tpu.dot_dimension_numbers<[1], [0], [0], [1], [0, 0, 1, 1], [], []>} : vector<16x72xbf16>, vector<72x8xbf16>, vector<16x8xf32> -> vector<16x8xf32>
    %5 = vector.extract_strided_slice %0 {offsets = [0, 72], sizes = [16, 72], strides = [1, 1]} : vector<16x288xbf16> to vector<16x72xbf16>
    %6 = vector.extract_strided_slice %1 {offsets = [0, 8], sizes = [72, 8], strides = [1, 1]} : vector<72x32xbf16> to vector<72x8xbf16>
    %cst_3 = arith.constant dense<0.000000e+00> : vector<16x8xf32>
    %7 = tpu.matmul %5, %6, %cst_3 {dimension_numbers = #tpu.dot_dimension_numbers<[1], [0], [0], [1], [0, 0, 1, 1], [], []>} : vector<16x72xbf16>, vector<72x8xbf16>, vector<16x8xf32> -> vector<16x8xf32>
    %8 = vector.extract_strided_slice %0 {offsets = [0, 144], sizes = [16, 72], strides = [1, 1]} : vector<16x288xbf16> to vector<16x72xbf16>
    %9 = vector.extract_strided_slice %1 {offsets = [0, 16], sizes = [72, 8], strides = [1, 1]} : vector<72x32xbf16> to vector<72x8xbf16>
    %cst_4 = arith.constant dense<0.000000e+00> : vector<16x8xf32>
    %10 = tpu.matmul %8, %9, %cst_4 {dimension_numbers = #tpu.dot_dimension_numbers<[1], [0], [0], [1], [0, 0, 1, 1], [], []>} : vector<16x72xbf16>, vector<72x8xbf16>, vector<16x8xf32> -> vector<16x8xf32>
    %11 = vector.extract_strided_slice %0 {offsets = [0, 216], sizes = [16, 72], strides = [1, 1]} : vector<16x288xbf16> to vector<16x72xbf16>
    %12 = vector.extract_strided_slice %1 {offsets = [0, 24], sizes = [72, 8], strides = [1, 1]} : vector<72x32xbf16> to vector<72x8xbf16>
    %cst_5 = arith.constant dense<0.000000e+00> : vector<16x8xf32>
    %13 = tpu.matmul %11, %12, %cst_5 {dimension_numbers = #tpu.dot_dimension_numbers<[1], [0], [0], [1], [0, 0, 1, 1], [], []>} : vector<16x72xbf16>, vector<72x8xbf16>, vector<16x8xf32> -> vector<16x8xf32>
    %14 = tpu.concatenate %4, %7, %10, %13 in 1 : vector<16x8xf32>, vector<16x8xf32>, vector<16x8xf32>, vector<16x8xf32> -> vector<16x32xf32>
    %c0_6 = arith.constant 0 : index
    %c0_7 = arith.constant 0 : index
    %15 = vector.load %arg3[%c0_6, %c0_7] : memref<1x32xf32, #tpu.memory_space<vmem>>, vector<1x32xf32>
    %16 = vector.broadcast %15 : vector<1x32xf32> to vector<16x32xf32>
    %17 = arith.addf %14, %16 : vector<16x32xf32>
    %cst_8 = arith.constant 0.000000e+00 : f32
    %18 = vector.broadcast %cst_8 : f32 to vector<16x32xf32>
    %19 = arith.maximumf %17, %18 : vector<16x32xf32>
    %20 = arith.truncf %19 : vector<16x32xf32> to vector<16x32xbf16>
    %c0_9 = arith.constant 0 : index
    %c0_10 = arith.constant 0 : index
    %21 = vector.load %arg4[%c0_9, %c0_10] : memref<16x32xbf16, #tpu.memory_space<vmem>>, vector<16x32xbf16>
    tpu.vector_store %arg4[%c0_9, %c0_10], %20 {strides = array<i32>} : memref<16x32xbf16, #tpu.memory_space<vmem>>, vector<16x32xbf16>,
    return
  }
  func.func @transform_0(%arg0: i32) -> (i32, i32) {
    %c0_i32 = arith.constant 0 : i32
    %c0_i32_0 = arith.constant 0 : i32
    return %arg0, %c0_i32 : i32, i32
  }
  func.func @transform_1(%arg0: i32) -> (i32, i32) {
    %c0_i32 = arith.constant 0 : i32
    %c0_i32_0 = arith.constant 0 : i32
    %c0_i32_1 = arith.constant 0 : i32
    return %c0_i32, %c0_i32_0 : i32, i32
  }
  func.func @transform_2(%arg0: i32) -> (i32, i32) {
    %c0_i32 = arith.constant 0 : i32
    %c0_i32_0 = arith.constant 0 : i32
    %c0_i32_1 = arith.constant 0 : i32
    return %c0_i32, %c0_i32_0 : i32, i32
  }
  func.func @transform_3(%arg0: i32) -> (i32, i32) {
    %c0_i32 = arith.constant 0 : i32
    %c0_i32_0 = arith.constant 0 : i32
    return %arg0, %c0_i32 : i32, i32
  }
}

module attributes {stable_mosaic.version = 11 : i64} {
  func.func @_conv3_proj_kernel(%arg0: i32, %arg1: i32, %arg2: memref<16x32xbf16, #tpu.memory_space<vmem>>, %arg3: memref<32x64xbf16, #tpu.memory_space<vmem>>, %arg4: memref<1x64xf32, #tpu.memory_space<vmem>>, %arg5: memref<16x16xbf16, #tpu.memory_space<vmem>>, %arg6: memref<16x64xbf16, #tpu.memory_space<vmem>>, %arg7: memref<1x64xf32, #tpu.memory_space<vmem>>, %arg8: memref<16x64xf32, #tpu.memory_space<vmem>>) attributes {dimension_semantics = [#tpu.dimension_semantics<parallel>, #tpu.dimension_semantics<parallel>], iteration_bounds = array<i64: 2, 1>, scalar_prefetch = 0 : i64, scratch_operands = 0 : i64, tpu.core_type = #tpu.core_type<tc>, window_params = [{transform_indices = @transform_0, window_bounds = array<i64: 16, 32>}, {transform_indices = @transform_1, window_bounds = array<i64: 32, 64>}, {transform_indices = @transform_2, window_bounds = array<i64: 1, 64>}, {transform_indices = @transform_3, window_bounds = array<i64: 16, 16>}, {transform_indices = @transform_4, window_bounds = array<i64: 16, 64>}, {transform_indices = @transform_5, window_bounds = array<i64: 1, 64>}, {transform_indices = @transform_6, window_bounds = array<i64: 16, 64>}]} {
    %c0 = arith.constant 0 : index
    %c0_0 = arith.constant 0 : index
    %0 = vector.load %arg2[%c0, %c0_0] : memref<16x32xbf16, #tpu.memory_space<vmem>>, vector<16x32xbf16>
    %c0_1 = arith.constant 0 : index
    %c0_2 = arith.constant 0 : index
    %1 = vector.load %arg3[%c0_1, %c0_2] : memref<32x64xbf16, #tpu.memory_space<vmem>>, vector<32x64xbf16>
    %cst = arith.constant dense<0.000000e+00> : vector<16x64xf32>
    %2 = tpu.matmul %0, %1, %cst {dimension_numbers = #tpu.dot_dimension_numbers<[1], [0], [0], [1], [0, 0, 1, 1], [], []>} : vector<16x32xbf16>, vector<32x64xbf16>, vector<16x64xf32> -> vector<16x64xf32>
    %c0_3 = arith.constant 0 : index
    %c0_4 = arith.constant 0 : index
    %3 = vector.load %arg4[%c0_3, %c0_4] : memref<1x64xf32, #tpu.memory_space<vmem>>, vector<1x64xf32>
    %4 = vector.broadcast %3 : vector<1x64xf32> to vector<16x64xf32>
    %5 = arith.addf %2, %4 : vector<16x64xf32>
    %c0_5 = arith.constant 0 : index
    %c0_6 = arith.constant 0 : index
    %6 = vector.load %arg5[%c0_5, %c0_6] : memref<16x16xbf16, #tpu.memory_space<vmem>>, vector<16x16xbf16>
    %c0_7 = arith.constant 0 : index
    %c0_8 = arith.constant 0 : index
    %7 = vector.load %arg6[%c0_7, %c0_8] : memref<16x64xbf16, #tpu.memory_space<vmem>>, vector<16x64xbf16>
    %cst_9 = arith.constant dense<0.000000e+00> : vector<16x64xf32>
    %8 = tpu.matmul %6, %7, %cst_9 {dimension_numbers = #tpu.dot_dimension_numbers<[1], [0], [0], [1], [0, 0, 1, 1], [], []>} : vector<16x16xbf16>, vector<16x64xbf16>, vector<16x64xf32> -> vector<16x64xf32>
    %9 = arith.addf %5, %8 : vector<16x64xf32>
    %c0_10 = arith.constant 0 : index
    %c0_11 = arith.constant 0 : index
    %10 = vector.load %arg7[%c0_10, %c0_11] : memref<1x64xf32, #tpu.memory_space<vmem>>, vector<1x64xf32>
    %11 = vector.broadcast %10 : vector<1x64xf32> to vector<16x64xf32>
    %12 = arith.addf %9, %11 : vector<16x64xf32>
    %cst_12 = arith.constant 0.000000e+00 : f32
    %13 = vector.broadcast %cst_12 : f32 to vector<16x64xf32>
    %14 = arith.maximumf %12, %13 : vector<16x64xf32>
    %c0_13 = arith.constant 0 : index
    %c0_14 = arith.constant 0 : index
    %15 = vector.load %arg8[%c0_13, %c0_14] : memref<16x64xf32, #tpu.memory_space<vmem>>, vector<16x64xf32>
    tpu.vector_store %arg8[%c0_13, %c0_14], %14 {strides = array<i32>} : memref<16x64xf32, #tpu.memory_space<vmem>>, vector<16x64xf32>,
    return
  }
  func.func @transform_0(%arg0: i32, %arg1: i32) -> (i32, i32) {
    %c0_i32 = arith.constant 0 : i32
    %c0_i32_0 = arith.constant 0 : i32
    return %arg0, %c0_i32 : i32, i32
  }
  func.func @transform_1(%arg0: i32, %arg1: i32) -> (i32, i32) {
    %c0_i32 = arith.constant 0 : i32
    %c0_i32_0 = arith.constant 0 : i32
    return %c0_i32, %arg1 : i32, i32
  }
  func.func @transform_2(%arg0: i32, %arg1: i32) -> (i32, i32) {
    %c0_i32 = arith.constant 0 : i32
    %c0_i32_0 = arith.constant 0 : i32
    return %c0_i32, %arg1 : i32, i32
  }
  func.func @transform_3(%arg0: i32, %arg1: i32) -> (i32, i32) {
    %c0_i32 = arith.constant 0 : i32
    %c0_i32_0 = arith.constant 0 : i32
    return %arg0, %c0_i32 : i32, i32
  }
  func.func @transform_4(%arg0: i32, %arg1: i32) -> (i32, i32) {
    %c0_i32 = arith.constant 0 : i32
    %c0_i32_0 = arith.constant 0 : i32
    return %c0_i32, %arg1 : i32, i32
  }
  func.func @transform_5(%arg0: i32, %arg1: i32) -> (i32, i32) {
    %c0_i32 = arith.constant 0 : i32
    %c0_i32_0 = arith.constant 0 : i32
    return %c0_i32, %arg1 : i32, i32
  }
  func.func @transform_6(%arg0: i32, %arg1: i32) -> (i32, i32) {
    %c0_i32 = arith.constant 0 : i32
    return %arg0, %arg1 : i32, i32
  }
}

</mosaic_0001>

<llo_original>
// kernel: block_forward.3
$region0: #{block_forward.3}
  #allocation0 [shape = 'u32[]', space=smem, size = 0x4, offset = 0x4, fixed_abs, tag = 'smem constant byte address 0x4 - core index']
  #allocation1 [shape = 'u32[144,128]{1,0:T(1,128)}', space=vmem, size = 0x12000, scoped, tag = 'internal scratch']
  %s0 = inlined_call_operand.vmem [shape: bf16[128,16], index: 0, kind: input, shape index: {}]
  %s1 = inlined_call_operand.vmem [shape: bf16[16,32], index: 1, kind: input, shape index: {}]
  %s2 = inlined_call_operand.vmem [shape: f32[1,32], index: 2, kind: input, shape index: {}]
  %s3 = inlined_call_operand.vmem [shape: bf16[128,32], index: 3, kind: output, shape index: {}]
  %s4 = sld [smem:[#allocation0]]
  $region45: #{block_forward.3} parent=0
    _
  %s6 = ssub.s32 1, %s4
  %s7 = scalar_select 0, %s6, %s4
  loop: start=0, step=1, limit=4
  $region2: #{block_forward.3} parent=0 // loop_pre_header
    _
  $region3: #{block_forward.3} parent=0 // loop_header
    %s9 = sphi 0, %s13
    %p10 = scmp.ge.s32.totalorder %s9, 4
    %s16 = sphi 0, %s28
    %s17 = sphi 0, %s24
    %s18 = sphi 0, %s16
    %s19 = sphi 0, %s17
    %s20 = sphi 0, %s18
    %s21 = sphi 0, %s19
    %s31 = sphi 0, %s33
    %s34 = sphi 0, %s31
    %s35 = sphi 0, %s34
    %s51 = sphi 0, %s35
    %s57 = sphi 0, %s59
    %s60 = sphi 0, %s57
    %s61 = sphi 0, %s60
    %s77 = sphi 0, %s61
    %s83 = sphi 0, %s85
    %s86 = sphi 0, %s83
    %s87 = sphi 0, %s86
    %s103 = sphi 0, %s87
    %s111 = sphi 0, %s113
    %s114 = sphi 0, %s111
    %s115 = sphi 0, %s114
    %s131 = sphi 0, %s115
  $region4: #{block_forward.3} parent=0 // loop_header_branch
    %12 = sbr.rel (%p10) target = $region8
  $region5: #{block_forward.3} parent=0 // loop_body
    %s14 = ssub.s32 %s9, 1
    %s15 = ssub.s32 %s9, 2
    %s22 = sadd.s32 1, %s17
    %p23 = scmp.ge.s32.totalorder %s22, 1
    %s24 = scalar_select %p23, 0, %s22
    %s25 = sadd.s32 1, %s16
    %s26 = scalar_select %p23, %s25, %s16
    %p27 = scmp.ge.s32.totalorder %s26, 2
    %s28 = scalar_select %p27, 0, %s26
    %s29 = ssub.s32 %s16, %s28
    %p30 = scmp.eq.s32.totalorder %s29, 0
    %s32 = sadd.s32 %s31, 1
    %s33 = scalar_select %p30, %s31, %s32
    %p36 = pneg %p30
    %p37 = scmp.eq.s32.totalorder %s9, 1
    %p38 = por %p36, %p37
    %p39 = scmp.ne.s32.totalorder %s31, %s34
    %p40 = scmp.eq.s32.totalorder %s9, 0
    %p41 = por %p39, %p40
    %p42 = scmp.ne.s32.totalorder %s31, %s34
    %p43 = scmp.eq.s32.totalorder %s14, 1
    %p44 = por %p42, %p43
    %p45 = scmp.ne.s32.totalorder %s34, %s35
    %p46 = scmp.eq.s32.totalorder %s14, 0
    %p47 = por %p45, %p46
    %p48 = scmp.ne.s32.totalorder %s34, %s35
    %p49 = scmp.eq.s32.totalorder %s15, 1
    %p50 = por %p48, %p49
    %p52 = scmp.ne.s32.totalorder %s35, %s51
    %p53 = scmp.eq.s32.totalorder %s15, 0
    %p54 = por %p52, %p53
    %s55 = ssub.s32 %s17, %s24
    %p56 = scmp.eq.s32.totalorder %s55, 0
    %s58 = sadd.s32 %s57, 1
    %s59 = scalar_select %p56, %s57, %s58
    %p62 = pneg %p56
    %p63 = scmp.eq.s32.totalorder %s9, 1
    %p64 = por %p62, %p63
    %p65 = scmp.ne.s32.totalorder %s57, %s60
    %p66 = scmp.eq.s32.totalorder %s9, 0
    %p67 = por %p65, %p66
    %p68 = scmp.ne.s32.totalorder %s57, %s60
    %p69 = scmp.eq.s32.totalorder %s14, 1
    %p70 = por %p68, %p69
    %p71 = scmp.ne.s32.totalorder %s60, %s61
    %p72 = scmp.eq.s32.totalorder %s14, 0
    %p73 = por %p71, %p72
    %p74 = scmp.ne.s32.totalorder %s60, %s61
    %p75 = scmp.eq.s32.totalorder %s15, 1
    %p76 = por %p74, %p75
    %p78 = scmp.ne.s32.totalorder %s61, %s77
    %p79 = scmp.eq.s32.totalorder %s15, 0
    %p80 = por %p78, %p79
    %s81 = ssub.s32 %s17, %s24
    %p82 = scmp.eq.s32.totalorder %s81, 0
    %s84 = sadd.s32 %s83, 1
    %s85 = scalar_select %p82, %s83, %s84
    %p88 = pneg %p82
    %p89 = scmp.eq.s32.totalorder %s9, 1
    %p90 = por %p88, %p89
    %p91 = scmp.ne.s32.totalorder %s83, %s86
    %p92 = scmp.eq.s32.totalorder %s9, 0
    %p93 = por %p91, %p92
    %p94 = scmp.ne.s32.totalorder %s83, %s86
    %p95 = scmp.eq.s32.totalorder %s14, 1
    %p96 = por %p94, %p95
    %p97 = scmp.ne.s32.totalorder %s86, %s87
    %p98 = scmp.eq.s32.totalorder %s14, 0
    %p99 = por %p97, %p98
    %p100 = scmp.ne.s32.totalorder %s86, %s87
    %p101 = scmp.eq.s32.totalorder %s15, 1
    %p102 = por %p100, %p101
    %p104 = scmp.ne.s32.totalorder %s87, %s103
    %p105 = scmp.eq.s32.totalorder %s15, 0
    %p106 = por %p104, %p105
    %s107 = ssub.s32 %s16, %s28
    %s108 = ssub.s32 %s17, %s24
    %s109 = sor.u32 %s107, %s108
    %p110 = scmp.eq.s32.totalorder %s109, 0
    %s112 = sadd.s32 %s111, 1
    %s113 = scalar_select %p110, %s111, %s112
    %p116 = pneg %p110
    %p117 = scmp.eq.s32.totalorder %s9, 1
    %p118 = por %p116, %p117
    %p119 = scmp.ne.s32.totalorder %s111, %s114
    %p120 = scmp.eq.s32.totalorder %s9, 0
    %p121 = por %p119, %p120
    %p122 = scmp.ne.s32.totalorder %s111, %s114
    %p123 = scmp.eq.s32.totalorder %s14, 1
    %p124 = por %p122, %p123
    %p125 = scmp.ne.s32.totalorder %s114, %s115
    %p126 = scmp.eq.s32.totalorder %s14, 0
    %p127 = por %p125, %p126
    %p128 = scmp.ne.s32.totalorder %s114, %s115
    %p129 = scmp.eq.s32.totalorder %s15, 1
    %p130 = por %p128, %p129
    %p132 = scmp.ne.s32.totalorder %s115, %s131
    %p133 = scmp.eq.s32.totalorder %s15, 0
    %p134 = por %p132, %p133
    %p135 = scmp.le.s32.totalorder 1, %s9
    %p136 = scmp.lt.s32.totalorder %s9, 3
    %p137 = pnand %p135, %p136
    %p138 = pneg %p137
    // Predicated region
    $region9: #{block_forward.3} parent=5 // pred_check
      _
    $region10: #{block_forward.3} parent=5 // pred_check_branch
      %140 = sbr.rel (%p137) target = $region12
    $region11: #{block_forward.3} parent=5 // pred_region
      %s141 = ssub.s32 %s9, 1
      // Predicated region
      $region13: #{block_forward.3} parent=11 // pred_check
        %p142 = pneg %p73
      $region14: #{block_forward.3} parent=11 // pred_check_branch
        %144 = sbr.rel (%p142) target = $region16
      $region15: #{block_forward.3} parent=11 // pred_region
        %p145 = scmp.lt.s32.totalorder %s19, 0
        %s146 = scalar_select %p145, %s19, 0
        %s147 = smul.addr %s146, 4
        %s148 = scalar_lea.vmem %s1, %s147
      $region16: #{block_forward.3} parent=11 // pred_fallthru
        _
      // Predicated region
      $region17: #{block_forward.3} parent=11 // pred_check
        %p149 = pneg %p99
      $region18: #{block_forward.3} parent=11 // pred_check_branch
        %151 = sbr.rel (%p149) target = $region20
      $region19: #{block_forward.3} parent=11 // pred_region
        %p152 = scmp.lt.s32.totalorder %s19, 0
        %s153 = scalar_select %p152, %s19, 0
        %s154 = scalar_lea.vmem %s2, %s153
      $region20: #{block_forward.3} parent=11 // pred_fallthru
        _
    $region12: #{block_forward.3} parent=5 // pred_fallthru
      _
    %p155 = scmp.lt.s32.totalorder %s9, 2
    // Predicated region
    $region21: #{block_forward.3} parent=5 // pred_check
      %p156 = pneg %p155
    $region22: #{block_forward.3} parent=5 // pred_check_branch
      %158 = sbr.rel (%p156) target = $region24
    $region23: #{block_forward.3} parent=5 // pred_region
      // Predicated region
      $region25: #{block_forward.3} parent=23 // pred_check
        %p159 = pneg %p41
      $region26: #{block_forward.3} parent=23 // pred_check_branch
        %161 = sbr.rel (%p159) target = $region28
      $region27: #{block_forward.3} parent=23 // pred_region
        %s162 = smul.u32 8, %s16
        %p163 = scmp.lt.s32.totalorder %s162, 15
        %s164 = scalar_select %p163, %s162, 15
        %s165 = smul.addr %s164, 4
        %s166 = scalar_lea.vmem %s0, %s165
        %s167 = smul.u32 8, %s16
      $region28: #{block_forward.3} parent=23 // pred_fallthru
        _
    $region24: #{block_forward.3} parent=5 // pred_fallthru
      _
    %p168 = scmp.le.s32.totalorder 1, %s9
    %p169 = scmp.lt.s32.totalorder %s9, 3
    %p170 = pnand %p168, %p169
    %p171 = pneg %p170
    // Predicated region
    $region29: #{block_forward.3} parent=5 // pred_check
      _
    $region30: #{block_forward.3} parent=5 // pred_check_branch
      %173 = sbr.rel (%p170) target = $region32
    $region31: #{block_forward.3} parent=5 // pred_region
      %s174 = ssub.s32 %s9, 1
      %s175 = smul.u32 8, %s18
      %p176 = scmp.lt.s32.totalorder %s175, 15
      %s177 = scalar_select %p176, %s175, 15
      %s178 = smul.addr %s177, 4
      %s179 = scalar_lea.vmem %s0, %s178
      %p180 = pneg %p47
      %p181 = pneg %p44
      %p182 = scmp.lt.s32.totalorder %s19, 0
      %s183 = scalar_select %p182, %s19, 0
      %s184 = smul.addr %s183, 4
      %s185 = scalar_lea.vmem %s1, %s184
      %p186 = pneg %p73
      %p187 = pneg %p70
      %p188 = scmp.lt.s32.totalorder %s19, 0
      %s189 = scalar_select %p188, %s19, 0
      %s190 = scalar_lea.vmem %s2, %s189
      %p191 = pneg %p99
      %p192 = pneg %p96
      %p193 = pneg %p127
      %p194 = pneg %p124
      %s195 = smul.u32 8, %s18
      %p196 = scmp.lt.s32.totalorder %s195, 15
      %s197 = scalar_select %p196, %s195, 15
      %p198 = scmp.lt.s32.totalorder %s19, 0
      %s199 = scalar_select %p198, %s19, 0
      %s200 = sadd.s32 %s199, %s197
      %s201 = smul.addr %s200, 4
      %s202 = scalar_lea.vmem %s3, %s201
      %s203 = smul.u32 8, %s18
      %p204 = scmp.lt.s32.totalorder %s203, 15
      %s205 = scalar_select %p204, %s203, 15
      %s206 = smul.addr %s205, 4
      %s207 = scalar_lea.vmem %s0, %s206
      %s208 = smul.u32 8, %s18
      %p209 = scmp.lt.s32.totalorder %s19, 0
      %s210 = scalar_select %p209, %s19, 0
      %s211 = smul.addr %s210, 4
      %s212 = scalar_lea.vmem %s1, %s211
      %p213 = scmp.lt.s32.totalorder %s19, 0
      %s214 = scalar_select %p213, %s19, 0
      %s215 = scalar_lea.vmem %s2, %s214
      %s216 = smul.u32 8, %s18
      %p217 = scmp.lt.s32.totalorder %s216, 15
      %s218 = scalar_select %p217, %s216, 15
      %p219 = scmp.lt.s32.totalorder %s19, 0
      %s220 = scalar_select %p219, %s19, 0
      %s221 = sadd.s32 %s220, %s218
      %s222 = smul.addr %s221, 4
      %s223 = scalar_lea.vmem %s3, %s222
      %s224 = smul.u32 8, %s18
      %v226 = vld [vmem:[%s207] sm:$0xf]
      %v227 = vld [vmem:[%s207 + $0x4] sm:$0xf]
      %v228 = vld [vmem:[%s207 + $0x8] sm:$0xf]
      %v229 = vld [vmem:[%s207 + $0xc] sm:$0xf]
      %v230 = vld [vmem:[%s207 + $0x10] sm:$0xf]
      %v231 = vld [vmem:[%s207 + $0x14] sm:$0xf]
      %v232 = vld [vmem:[%s207 + $0x18] sm:$0xf]
      %v233 = vld [vmem:[%s207 + $0x1c] sm:$0xf]
      %v234 = vld [vmem:[%s212] sm:$0xf]
      %v235 = vld [vmem:[%s212 + $0x4] sm:$0xf]
      %v236 = vld [vmem:[%s215] sm:$0x1]
      %v238 = vlaneseq
      %v239 = vshrl.u32 %v238, 7
      %v240 = vsub.s32 0, %v239
      %v241 = vrot.slane %v236, %v240
      %v251 = vunpack.c.l.b16 %v226
      %v252 = vunpack.c.l.b16 %v227
      %v253 = vunpack.c.l.b16 %v228
      %v254 = vunpack.c.l.b16 %v229
      %v255 = vunpack.c.l.b16 %v230
      %v256 = vunpack.c.l.b16 %v231
      %v257 = vunpack.c.l.b16 %v232
      %v258 = vunpack.c.l.b16 %v233
      %v259 = vpack.c.b16 %v252, %v251
      %v260 = vpack.c.b16 %v254, %v253
      %v261 = vpack.c.b16 %v256, %v255
      %v262 = vpack.c.b16 %v258, %v257
      %v265 = vunpack.c.l.b16 %v234
      %v266 = vunpack.c.l.b16 %v235
      %v267 = vpack.c.b16 %v266, %v265
      %vm269 = vcmask 130048
      %v271 = vsel %vm269, %v259, 0
      %v274 = vsel %vm269, %v260, 0
      %v277 = vsel %vm269, %v261, 0
      %v280 = vsel %vm269, %v262, 0
      %282 = vmatprep.subr.bf16.mxu0 0
      %283 = vmatpush1.bf16.msra.mxu0 %v267
      %284 = vmatprep.subr.bf16.mxu0 0
      %285 = vmatpush1.bf16.msra.mxu0 0
      %286 = vmatprep.subr.bf16.mxu0 0
      %287 = vmatpush1.bf16.msra.mxu0 0
      %288 = vmatprep.subr.bf16.mxu0 0
      %289 = vmatpush1.bf16.msra.mxu0 0
      %290 = vmatprep.subr.bf16.mxu0 0
      %291 = vmatpush1.bf16.msra.mxu0 0
      %292 = vmatprep.subr.bf16.mxu0 0
      %293 = vmatpush1.bf16.msra.mxu0 0
      %294 = vmatprep.subr.bf16.mxu0 0
      %295 = vmatpush1.bf16.msra.mxu0 0
      %296 = vmatprep.subr.bf16.mxu0 0
      %297 = vmatpush1.bf16.msra.mxu0 0
      %298 = vmatprep.subr.bf16.mxu0 0
      %299 = vmatpush1.bf16.msra.mxu0 0
      %300 = vmatprep.subr.bf16.mxu0 0
      %301 = vmatpush1.bf16.msra.mxu0 0
      %302 = vmatprep.subr.bf16.mxu0 0
      %303 = vmatpush1.bf16.msra.mxu0 0
      %304 = vmatprep.subr.bf16.mxu0 0
      %305 = vmatpush1.bf16.msra.mxu0 0
      %306 = vmatprep.subr.bf16.mxu0 0
      %307 = vmatpush1.bf16.msra.mxu0 0
      %308 = vmatprep.subr.bf16.mxu0 0
      %309 = vmatpush1.bf16.msra.mxu0 0
      %310 = vmatprep.subr.bf16.mxu0 0
      %311 = vmatpush1.bf16.msra.mxu0 0
      %312 = vmatprep.subr.bf16.mxu0 0
      %313 = vmatpush1.bf16.msra.mxu0 0
      %314 = vmatprep.mubr.bf16.mxu0 0
      %315 = vmatmul.mubr.bf16.gmra.mrb[0].mxu0 %v271
      %v316 = vpop.f32.mrb[0].mxu0
      %v317 = vadd.f32 %v241, %v316
      %v318 = vpop.f32.mrb[0].mxu0
      %v319 = vpop.f32.mrb[0].mxu0
      %v320 = vadd.f32 %v241, %v319
      %v321 = vpop.f32.mrb[0].mxu0
      %322 = vmatprep.mubr.bf16.mxu0 0
      %323 = vmatmul.mubr.bf16.gmra.mrb[0].mxu0 %v274
      %v324 = vpop.f32.mrb[0].mxu0
      %v325 = vadd.f32 %v241, %v324
      %v326 = vpop.f32.mrb[0].mxu0
      %v327 = vpop.f32.mrb[0].mxu0
      %v328 = vadd.f32 %v241, %v327
      %v329 = vpop.f32.mrb[0].mxu0
      %330 = vmatprep.mubr.bf16.mxu0 0
      %331 = vmatmul.mubr.bf16.gmra.mrb[0].mxu0 %v277
      %v332 = vpop.f32.mrb[0].mxu0
      %v333 = vadd.f32 %v241, %v332
      %v334 = vpop.f32.mrb[0].mxu0
      %v335 = vpop.f32.mrb[0].mxu0
      %v336 = vadd.f32 %v241, %v335
      %v337 = vpop.f32.mrb[0].mxu0
      %338 = vmatprep.mubr.bf16.mxu0 0
      %339 = vmatmul.mubr.bf16.gmra.mrb[0].mxu0 %v280
      %v340 = vpop.f32.mrb[0].mxu0
      %v341 = vadd.f32 %v241, %v340
      %v342 = vpop.f32.mrb[0].mxu0
      %v343 = vpop.f32.mrb[0].mxu0
      %v344 = vadd.f32 %v241, %v343
      %v345 = vpop.f32.mrb[0].mxu0
      %346 = vdwg.mxu0
      %v347 = vmax.f32 %v317, 0.0
      %v348 = vmax.f32 %v320, 0.0
      %v349 = vmax.f32 %v325, 0.0
      %v350 = vmax.f32 %v328, 0.0
      %v351 = vmax.f32 %v333, 0.0
      %v352 = vmax.f32 %v336, 0.0
      %v353 = vmax.f32 %v341, 0.0
      %v354 = vmax.f32 %v344, 0.0
      %v355 = vpack.c.bf16 %v348, %v347
      %v356 = vpack.c.bf16 %v350, %v349
      %v357 = vpack.c.bf16 %v352, %v351
      %v358 = vpack.c.bf16 %v354, %v353
      %v363 = vunpack.c.l.b16 %v355
      %v364 = vunpack.c.h.b16 %v355
      %v365 = vunpack.c.l.b16 %v356
      %v366 = vunpack.c.h.b16 %v356
      %v367 = vunpack.c.l.b16 %v357
      %v368 = vunpack.c.h.b16 %v357
      %v369 = vunpack.c.l.b16 %v358
      %v370 = vunpack.c.h.b16 %v358
      %v371 = vpack.c.b16 %v363, %v363
      %v372 = vpack.c.b16 %v364, %v364
      %v373 = vpack.c.b16 %v365, %v365
      %v374 = vpack.c.b16 %v366, %v366
      %v375 = vpack.c.b16 %v367, %v367
      %v376 = vpack.c.b16 %v368, %v368
      %v377 = vpack.c.b16 %v369, %v369
      %v378 = vpack.c.b16 %v370, %v370
      %vm387 = vcmask 257024
      %388 = vst.msk [vmem:[%s223] sm:$0xf] %vm387, %v371
      %389 = vst.msk [vmem:[%s223 + $0x4] sm:$0xf] %vm387, %v372
      %390 = vst.msk [vmem:[%s223 + $0x8] sm:$0xf] %vm387, %v373
      %391 = vst.msk [vmem:[%s223 + $0xc] sm:$0xf] %vm387, %v374
      %392 = vst.msk [vmem:[%s223 + $0x10] sm:$0xf] %vm387, %v375
      %393 = vst.msk [vmem:[%s223 + $0x14] sm:$0xf] %vm387, %v376
      %394 = vst.msk [vmem:[%s223 + $0x18] sm:$0xf] %vm387, %v377
      %395 = vst.msk [vmem:[%s223 + $0x1c] sm:$0xf] %vm387, %v378
      %s396 = smul.u32 8, %s18
      %p397 = scmp.lt.s32.totalorder %s396, 15
      %s398 = scalar_select %p397, %s396, 15
      %p399 = scmp.lt.s32.totalorder %s19, 0
      %s400 = scalar_select %p399, %s19, 0
      %s401 = sadd.s32 %s400, %s398
      %s402 = smul.addr %s401, 4
      %s403 = scalar_lea.vmem %s3, %s402
      // Predicated region
      $region33: #{block_forward.3} parent=31 // pred_check
        %p404 = pneg %p124
      $region34: #{block_forward.3} parent=31 // pred_check_branch
        %406 = sbr.rel (%p404) target = $region36
      $region35: #{block_forward.3} parent=31 // pred_region
        %s407 = smul.u32 8, %s18
      $region36: #{block_forward.3} parent=31 // pred_fallthru
        _
    $region32: #{block_forward.3} parent=5 // pred_fallthru
      _
    %p408 = scmp.le.s32.totalorder 2, %s9
    // Predicated region
    $region37: #{block_forward.3} parent=5 // pred_check
      %p409 = pneg %p408
    $region38: #{block_forward.3} parent=5 // pred_check_branch
      %411 = sbr.rel (%p409) target = $region40
    $region39: #{block_forward.3} parent=5 // pred_region
      %s412 = ssub.s32 %s9, 2
      // Predicated region
      $region41: #{block_forward.3} parent=39 // pred_check
        %p413 = pneg %p130
      $region42: #{block_forward.3} parent=39 // pred_check_branch
        %415 = sbr.rel (%p413) target = $region44
      $region43: #{block_forward.3} parent=39 // pred_region
        %s416 = smul.u32 8, %s20
        %p417 = scmp.lt.s32.totalorder %s416, 15
        %s418 = scalar_select %p417, %s416, 15
        %p419 = scmp.lt.s32.totalorder %s21, 0
        %s420 = scalar_select %p419, %s21, 0
        %s421 = sadd.s32 %s420, %s418
        %s422 = smul.addr %s421, 4
        %s423 = scalar_lea.vmem %s3, %s422
      $region44: #{block_forward.3} parent=39 // pred_fallthru
        _
    $region40: #{block_forward.3} parent=5 // pred_fallthru
      _
  $region6: #{block_forward.3} parent=0 // loop_footer
    %s13 = sadd.s32 1, %s9
  $region7: #{block_forward.3} parent=0 // loop_footer_branch
    %8 = sbr.rel target = $region3
  $region8: #{block_forward.3} parent=0 // loop_exit
    _

// kernel: block_forward.4
$region0: #{block_forward.4}
  #allocation0 [shape = 'u32[]', space=smem, size = 0x4, offset = 0x4, fixed_abs, tag = 'smem constant byte address 0x4 - core index']
  #allocation1 [shape = 'u32[144,128]{1,0:T(1,128)}', space=vmem, size = 0x12000, scoped, tag = 'internal scratch']
  %s0 = inlined_call_operand.vmem [shape: bf16[32,288], index: 0, kind: input, shape index: {}]
  %s1 = inlined_call_operand.vmem [shape: bf16[72,32], index: 1, kind: input, shape index: {}]
  %s2 = inlined_call_operand.vmem [shape: f32[1,32], index: 2, kind: input, shape index: {}]
  %s3 = inlined_call_operand.vmem [shape: bf16[32,32], index: 3, kind: output, shape index: {}]
  %s4 = sld [smem:[#allocation0]]
  $region45: #{block_forward.4} parent=0
    _
  %s6 = ssub.s32 1, %s4
  %s7 = scalar_select 0, %s6, %s4
  loop: start=0, step=1, limit=4
  $region2: #{block_forward.4} parent=0 // loop_pre_header
    _
  $region3: #{block_forward.4} parent=0 // loop_header
    %s9 = sphi 0, %s13
    %p10 = scmp.ge.s32.totalorder %s9, 4
    %s19 = sphi 0, %s21
    %s22 = sphi 0, %s19
    %s23 = sphi 0, %s22
    %s39 = sphi 0, %s23
    %s43 = sphi 0, %s43
    %s45 = sphi 0, %s43
    %s46 = sphi 0, %s45
    %s60 = sphi 0, %s46
    %s64 = sphi 0, %s64
    %s66 = sphi 0, %s64
    %s67 = sphi 0, %s66
    %s81 = sphi 0, %s67
    %s87 = sphi 0, %s89
    %s90 = sphi 0, %s87
    %s91 = sphi 0, %s90
    %s107 = sphi 0, %s91
  $region4: #{block_forward.4} parent=0 // loop_header_branch
    %12 = sbr.rel (%p10) target = $region8
  $region5: #{block_forward.4} parent=0 // loop_body
    %s14 = ssub.s32 %s9, 1
    %s15 = ssub.s32 %s9, 2
    %s16 = sadd.s32 %s9, 1
    %s17 = ssub.s32 %s9, %s16
    %p18 = scmp.eq.s32.totalorder %s17, 0
    %s20 = sadd.s32 %s19, 1
    %s21 = scalar_select %p18, %s19, %s20
    %p24 = pneg %p18
    %p25 = scmp.eq.s32.totalorder %s9, 1
    %p26 = por %p24, %p25
    %p27 = scmp.ne.s32.totalorder %s19, %s22
    %p28 = scmp.eq.s32.totalorder %s9, 0
    %p29 = por %p27, %p28
    %p30 = scmp.ne.s32.totalorder %s19, %s22
    %p31 = scmp.eq.s32.totalorder %s14, 1
    %p32 = por %p30, %p31
    %p33 = scmp.ne.s32.totalorder %s22, %s23
    %p34 = scmp.eq.s32.totalorder %s14, 0
    %p35 = por %p33, %p34
    %p36 = scmp.ne.s32.totalorder %s22, %s23
    %p37 = scmp.eq.s32.totalorder %s15, 1
    %p38 = por %p36, %p37
    %p40 = scmp.ne.s32.totalorder %s23, %s39
    %p41 = scmp.eq.s32.totalorder %s15, 0
    %p42 = por %p40, %p41
    %s44 = sadd.s32 %s43, 1
    %p47 = scmp.eq.s32.totalorder %s9, 1
    %p48 = scmp.ne.s32.totalorder %s43, %s45
    %p49 = scmp.eq.s32.totalorder %s9, 0
    %p50 = por %p48, %p49
    %p51 = scmp.ne.s32.totalorder %s43, %s45
    %p52 = scmp.eq.s32.totalorder %s14, 1
    %p53 = por %p51, %p52
    %p54 = scmp.ne.s32.totalorder %s45, %s46
    %p55 = scmp.eq.s32.totalorder %s14, 0
    %p56 = por %p54, %p55
    %p57 = scmp.ne.s32.totalorder %s45, %s46
    %p58 = scmp.eq.s32.totalorder %s15, 1
    %p59 = por %p57, %p58
    %p61 = scmp.ne.s32.totalorder %s46, %s60
    %p62 = scmp.eq.s32.totalorder %s15, 0
    %p63 = por %p61, %p62
    %s65 = sadd.s32 %s64, 1
    %p68 = scmp.eq.s32.totalorder %s9, 1
    %p69 = scmp.ne.s32.totalorder %s64, %s66
    %p70 = scmp.eq.s32.totalorder %s9, 0
    %p71 = por %p69, %p70
    %p72 = scmp.ne.s32.totalorder %s64, %s66
    %p73 = scmp.eq.s32.totalorder %s14, 1
    %p74 = por %p72, %p73
    %p75 = scmp.ne.s32.totalorder %s66, %s67
    %p76 = scmp.eq.s32.totalorder %s14, 0
    %p77 = por %p75, %p76
    %p78 = scmp.ne.s32.totalorder %s66, %s67
    %p79 = scmp.eq.s32.totalorder %s15, 1
    %p80 = por %p78, %p79
    %p82 = scmp.ne.s32.totalorder %s67, %s81
    %p83 = scmp.eq.s32.totalorder %s15, 0
    %p84 = por %p82, %p83
    %s85 = ssub.s32 %s9, %s16
    %p86 = scmp.eq.s32.totalorder %s85, 0
    %s88 = sadd.s32 %s87, 1
    %s89 = scalar_select %p86, %s87, %s88
    %p92 = pneg %p86
    %p93 = scmp.eq.s32.totalorder %s9, 1
    %p94 = por %p92, %p93
    %p95 = scmp.ne.s32.totalorder %s87, %s90
    %p96 = scmp.eq.s32.totalorder %s9, 0
    %p97 = por %p95, %p96
    %p98 = scmp.ne.s32.totalorder %s87, %s90
    %p99 = scmp.eq.s32.totalorder %s14, 1
    %p100 = por %p98, %p99
    %p101 = scmp.ne.s32.totalorder %s90, %s91
    %p102 = scmp.eq.s32.totalorder %s14, 0
    %p103 = por %p101, %p102
    %p104 = scmp.ne.s32.totalorder %s90, %s91
    %p105 = scmp.eq.s32.totalorder %s15, 1
    %p106 = por %p104, %p105
    %p108 = scmp.ne.s32.totalorder %s91, %s107
    %p109 = scmp.eq.s32.totalorder %s15, 0
    %p110 = por %p108, %p109
    %p111 = scmp.le.s32.totalorder 1, %s9
    %p112 = scmp.lt.s32.totalorder %s9, 3
    %p113 = pnand %p111, %p112
    %p114 = pneg %p113
    // Predicated region
    $region9: #{block_forward.4} parent=5 // pred_check
      _
    $region10: #{block_forward.4} parent=5 // pred_check_branch
      %116 = sbr.rel (%p113) target = $region12
    $region11: #{block_forward.4} parent=5 // pred_region
      %s117 = ssub.s32 %s9, 1
      // Predicated region
      $region13: #{block_forward.4} parent=11 // pred_check
        %p118 = pneg %p56
      $region14: #{block_forward.4} parent=11 // pred_check_branch
        %120 = sbr.rel (%p118) target = $region16
      $region15: #{block_forward.4} parent=11 // pred_region
        _
      $region16: #{block_forward.4} parent=11 // pred_fallthru
        _
      // Predicated region
      $region17: #{block_forward.4} parent=11 // pred_check
        %p121 = pneg %p77
      $region18: #{block_forward.4} parent=11 // pred_check_branch
        %123 = sbr.rel (%p121) target = $region20
      $region19: #{block_forward.4} parent=11 // pred_region
        _
      $region20: #{block_forward.4} parent=11 // pred_fallthru
        _
    $region12: #{block_forward.4} parent=5 // pred_fallthru
      _
    %p124 = scmp.lt.s32.totalorder %s9, 2
    // Predicated region
    $region21: #{block_forward.4} parent=5 // pred_check
      %p125 = pneg %p124
    $region22: #{block_forward.4} parent=5 // pred_check_branch
      %127 = sbr.rel (%p125) target = $region24
    $region23: #{block_forward.4} parent=5 // pred_region
      // Predicated region
      $region25: #{block_forward.4} parent=23 // pred_check
        %p128 = pneg %p29
      $region26: #{block_forward.4} parent=23 // pred_check_branch
        %130 = sbr.rel (%p128) target = $region28
      $region27: #{block_forward.4} parent=23 // pred_region
        %s131 = smul.u32 2, %s9
        %p132 = scmp.lt.s32.totalorder %s131, 3
        %s133 = scalar_select %p132, %s131, 3
        %s134 = smul.addr %s133, 3
        %s135 = smul.addr %s134, 4
        %s136 = scalar_lea.vmem %s0, %s135
        %s137 = smul.u32 2, %s9
      $region28: #{block_forward.4} parent=23 // pred_fallthru
        _
    $region24: #{block_forward.4} parent=5 // pred_fallthru
      _
    %p138 = scmp.le.s32.totalorder 1, %s9
    %p139 = scmp.lt.s32.totalorder %s9, 3
    %p140 = pnand %p138, %p139
    %p141 = pneg %p140
    // Predicated region
    $region29: #{block_forward.4} parent=5 // pred_check
      _
    $region30: #{block_forward.4} parent=5 // pred_check_branch
      %143 = sbr.rel (%p140) target = $region32
    $region31: #{block_forward.4} parent=5 // pred_region
      %s144 = ssub.s32 %s9, 1
      %s145 = smul.u32 2, %s14
      %p146 = scmp.lt.s32.totalorder %s145, 3
      %s147 = scalar_select %p146, %s145, 3
      %s148 = smul.addr %s147, 3
      %s149 = smul.addr %s148, 4
      %s150 = scalar_lea.vmem %s0, %s149
      %p151 = pneg %p35
      %p152 = pneg %p32
      %p153 = pneg %p56
      %p154 = pneg %p53
      %p155 = pneg %p77
      %p156 = pneg %p74
      %p157 = pneg %p103
      %p158 = pneg %p100
      %s159 = smul.u32 2, %s14
      %p160 = scmp.lt.s32.totalorder %s159, 3
      %s161 = scalar_select %p160, %s159, 3
      %s162 = smul.addr %s161, 4
      %s163 = scalar_lea.vmem %s3, %s162
      %s164 = smul.u32 2, %s14
      %p165 = scmp.lt.s32.totalorder %s164, 3
      %s166 = scalar_select %p165, %s164, 3
      %s167 = smul.addr %s166, 3
      %s168 = smul.addr %s167, 4
      %s169 = scalar_lea.vmem %s0, %s168
      %s170 = smul.u32 2, %s14
      %s171 = smul.u32 2, %s14
      %p172 = scmp.lt.s32.totalorder %s171, 3
      %s173 = scalar_select %p172, %s171, 3
      %s174 = smul.addr %s173, 4
      %s175 = scalar_lea.vmem %s3, %s174
      %s176 = smul.u32 2, %s14
      %v178 = vld [vmem:[%s169] sm:$0xff]
      %v179 = vld [vmem:[%s169 + $0x8] sm:$0xf]
      %v180 = vld [vmem:[%s169 + $0xc] sm:$0xff]
      %v181 = vld [vmem:[%s169 + $0x14] sm:$0xf]
      %v182 = vld [vmem:[%s1] sm:$0xf]
      %v183 = vld [vmem:[%s1 + $0x4] sm:$0xf]
      %v184 = vld [vmem:[%s1 + $0x8] sm:$0xf]
      %v185 = vld [vmem:[%s1 + $0xc] sm:$0xf]
      %v186 = vld [vmem:[%s1 + $0x10] sm:$0xf]
      %v187 = vld [vmem:[%s1 + $0x14] sm:$0xf]
      %v188 = vld [vmem:[%s1 + $0x18] sm:$0xf]
      %v189 = vld [vmem:[%s1 + $0x1c] sm:$0xf]
      %v190 = vld [vmem:[%s1 + $0x20] sm:$0xf]
      %v193 = vunpack.c.l.b16 %v178
      %v194 = vunpack.c.l.b16 %v180
      %v195 = vpack.c.b16 %v194, %v193
      %v205 = vunpack.c.l.b16 %v182
      %v206 = vunpack.c.l.b16 %v183
      %v207 = vunpack.c.l.b16 %v184
      %v208 = vunpack.c.l.b16 %v185
      %v209 = vunpack.c.l.b16 %v186
      %v210 = vunpack.c.l.b16 %v187
      %v211 = vunpack.c.l.b16 %v188
      %v212 = vunpack.c.l.b16 %v189
      %v213 = vunpack.c.l.b16 %v190
      %v214 = vpack.c.b16 %v206, %v205
      %v215 = vpack.c.b16 %v208, %v207
      %v216 = vpack.c.b16 %v210, %v209
      %v217 = vpack.c.b16 %v212, %v211
      %v218 = vpack.c.b16 %v213, %v213
      %vm223 = vcmask 588800
      %v225 = vsel %vm223, %v195, 0
      %vm227 = vcmask 1043456
      %v229 = vsel %vm227, %v218, 0
      %231 = vmatprep.subr.bf16.mxu0 0
      %232 = vmatpush1.bf16.msra.mxu0 %v214
      %233 = vmatprep.subr.bf16.mxu0 0
      %234 = vmatpush1.bf16.msra.mxu0 %v215
      %235 = vmatprep.subr.bf16.mxu0 0
      %236 = vmatpush1.bf16.msra.mxu0 %v216
      %237 = vmatprep.subr.bf16.mxu0 0
      %238 = vmatpush1.bf16.msra.mxu0 %v217
      %239 = vmatprep.subr.bf16.mxu0 0
      %240 = vmatpush1.bf16.msra.mxu0 %v229
      %241 = vmatprep.subr.bf16.mxu0 0
      %242 = vmatpush1.bf16.msra.mxu0 0
      %243 = vmatprep.subr.bf16.mxu0 0
      %244 = vmatpush1.bf16.msra.mxu0 0
      %245 = vmatprep.subr.bf16.mxu0 0
      %246 = vmatpush1.bf16.msra.mxu0 0
      %247 = vmatprep.subr.bf16.mxu0 0
      %248 = vmatpush1.bf16.msra.mxu0 0
      %249 = vmatprep.subr.bf16.mxu0 0
      %250 = vmatpush1.bf16.msra.mxu0 0
      %251 = vmatprep.subr.bf16.mxu0 0
      %252 = vmatpush1.bf16.msra.mxu0 0
      %253 = vmatprep.subr.bf16.mxu0 0
      %254 = vmatpush1.bf16.msra.mxu0 0
      %255 = vmatprep.subr.bf16.mxu0 0
      %256 = vmatpush1.bf16.msra.mxu0 0
      %257 = vmatprep.subr.bf16.mxu0 0
      %258 = vmatpush1.bf16.msra.mxu0 0
      %259 = vmatprep.subr.bf16.mxu0 0
      %260 = vmatpush1.bf16.msra.mxu0 0
      %261 = vmatprep.subr.bf16.mxu0 0
      %262 = vmatpush1.bf16.msra.mxu0 0
      %263 = vmatprep.mubr.bf16.mxu0 0
      %264 = vmatmul.mubr.bf16.gmra.mrb[0].mxu0 %v225
      %v265 = vpop.f32.mrb[0].mxu0
      %v266 = vadd.f32 0.0, %v265
      %v267 = vpop.f32.mrb[0].mxu0
      %v268 = vpop.f32.mrb[0].mxu0
      %v269 = vadd.f32 0.0, %v268
      %v270 = vpop.f32.mrb[0].mxu0
      %271 = vdwg.mxu0
      %v272 = vunpack.c.h.b16 %v178
      %v273 = vunpack.c.h.b16 %v180
      %v274 = vpack.c.b16 %v273, %v272
      %275 = vrot.lane.b32.xlu0 %v195, 56
      %v276 = vpop.permute.xlu0 %275
      %277 = vrot.lane.b32.xlu0 %v274, 56
      %v278 = vpop.permute.xlu0 %277
      %vm279 = vcmask 457728
      %v280 = vsel %vm279, %v276, %v278
      %281 = vrot.lane.b32.xlu0 %v214, 120
      %v282 = vpop.permute.xlu0 %281
      %283 = vrot.lane.b32.xlu0 %v215, 120
      %v284 = vpop.permute.xlu0 %283
      %285 = vrot.lane.b32.xlu0 %v216, 120
      %v286 = vpop.permute.xlu0 %285
      %287 = vrot.lane.b32.xlu0 %v217, 120
      %v288 = vpop.permute.xlu0 %287
      %289 = vrot.lane.b32.xlu0 %v218, 120
      %v290 = vpop.permute.xlu0 %289
      %v296 = vsel %vm223, %v280, 0
      %v299 = vsel %vm227, %v290, 0
      %301 = vmatprep.subr.bf16.mxu0 0
      %302 = vmatpush1.bf16.msra.mxu0 %v282
      %303 = vmatprep.subr.bf16.mxu0 0
      %304 = vmatpush1.bf16.msra.mxu0 %v284
      %305 = vmatprep.subr.bf16.mxu0 0
      %306 = vmatpush1.bf16.msra.mxu0 %v286
      %307 = vmatprep.subr.bf16.mxu0 0
      %308 = vmatpush1.bf16.msra.mxu0 %v288
      %309 = vmatprep.subr.bf16.mxu0 0
      %310 = vmatpush1.bf16.msra.mxu0 %v299
      %311 = vmatprep.subr.bf16.mxu0 0
      %312 = vmatpush1.bf16.msra.mxu0 0
      %313 = vmatprep.subr.bf16.mxu0 0
      %314 = vmatpush1.bf16.msra.mxu0 0
      %315 = vmatprep.subr.bf16.mxu0 0
      %316 = vmatpush1.bf16.msra.mxu0 0
      %317 = vmatprep.subr.bf16.mxu0 0
      %318 = vmatpush1.bf16.msra.mxu0 0
      %319 = vmatprep.subr.bf16.mxu0 0
      %320 = vmatpush1.bf16.msra.mxu0 0
      %321 = vmatprep.subr.bf16.mxu0 0
      %322 = vmatpush1.bf16.msra.mxu0 0
      %323 = vmatprep.subr.bf16.mxu0 0
      %324 = vmatpush1.bf16.msra.mxu0 0
      %325 = vmatprep.subr.bf16.mxu0 0
      %326 = vmatpush1.bf16.msra.mxu0 0
      %327 = vmatprep.subr.bf16.mxu0 0
      %328 = vmatpush1.bf16.msra.mxu0 0
      %329 = vmatprep.subr.bf16.mxu0 0
      %330 = vmatpush1.bf16.msra.mxu0 0
      %331 = vmatprep.subr.bf16.mxu0 0
      %332 = vmatpush1.bf16.msra.mxu0 0
      %333 = vmatprep.mubr.bf16.mxu0 0
      %334 = vmatmul.mubr.bf16.gmra.mrb[0].mxu0 %v296
      %v335 = vpop.f32.mrb[0].mxu0
      %v336 = vadd.f32 0.0, %v335
      %v337 = vpop.f32.mrb[0].mxu0
      %v338 = vpop.f32.mrb[0].mxu0
      %v339 = vadd.f32 0.0, %v338
      %v340 = vpop.f32.mrb[0].mxu0
      %341 = vdwg.mxu0
      %342 = vrot.lane.b32.xlu0 %v274, 112
      %v343 = vpop.permute.xlu0 %342
      %344 = vrot.lane.b32.xlu0 %v214, 112
      %v345 = vpop.permute.xlu0 %344
      %346 = vrot.lane.b32.xlu0 %v215, 112
      %v347 = vpop.permute.xlu0 %346
      %348 = vrot.lane.b32.xlu0 %v216, 112
      %v349 = vpop.permute.xlu0 %348
      %350 = vrot.lane.b32.xlu0 %v217, 112
      %v351 = vpop.permute.xlu0 %350
      %352 = vrot.lane.b32.xlu0 %v218, 112
      %v353 = vpop.permute.xlu0 %352
      %v359 = vsel %vm223, %v343, 0
      %v362 = vsel %vm227, %v353, 0
      %364 = vmatprep.subr.bf16.mxu0 0
      %365 = vmatpush1.bf16.msra.mxu0 %v345
      %366 = vmatprep.subr.bf16.mxu0 0
      %367 = vmatpush1.bf16.msra.mxu0 %v347
      %368 = vmatprep.subr.bf16.mxu0 0
      %369 = vmatpush1.bf16.msra.mxu0 %v349
      %370 = vmatprep.subr.bf16.mxu0 0
      %371 = vmatpush1.bf16.msra.mxu0 %v351
      %372 = vmatprep.subr.bf16.mxu0 0
      %373 = vmatpush1.bf16.msra.mxu0 %v362
      %374 = vmatprep.subr.bf16.mxu0 0
      %375 = vmatpush1.bf16.msra.mxu0 0
      %376 = vmatprep.subr.bf16.mxu0 0
      %377 = vmatpush1.bf16.msra.mxu0 0
      %378 = vmatprep.subr.bf16.mxu0 0
      %379 = vmatpush1.bf16.msra.mxu0 0
      %380 = vmatprep.subr.bf16.mxu0 0
      %381 = vmatpush1.bf16.msra.mxu0 0
      %382 = vmatprep.subr.bf16.mxu0 0
      %383 = vmatpush1.bf16.msra.mxu0 0
      %384 = vmatprep.subr.bf16.mxu0 0
      %385 = vmatpush1.bf16.msra.mxu0 0
      %386 = vmatprep.subr.bf16.mxu0 0
      %387 = vmatpush1.bf16.msra.mxu0 0
      %388 = vmatprep.subr.bf16.mxu0 0
      %389 = vmatpush1.bf16.msra.mxu0 0
      %390 = vmatprep.subr.bf16.mxu0 0
      %391 = vmatpush1.bf16.msra.mxu0 0
      %392 = vmatprep.subr.bf16.mxu0 0
      %393 = vmatpush1.bf16.msra.mxu0 0
      %394 = vmatprep.subr.bf16.mxu0 0
      %395 = vmatpush1.bf16.msra.mxu0 0
      %396 = vmatprep.mubr.bf16.mxu0 0
      %397 = vmatmul.mubr.bf16.gmra.mrb[0].mxu0 %v359
      %v398 = vpop.f32.mrb[0].mxu0
      %v399 = vadd.f32 0.0, %v398
      %v400 = vpop.f32.mrb[0].mxu0
      %v401 = vpop.f32.mrb[0].mxu0
      %v402 = vadd.f32 0.0, %v401
      %v403 = vpop.f32.mrb[0].mxu0
      %404 = vdwg.mxu0
      %v407 = vunpack.c.l.b16 %v179
      %v408 = vunpack.c.l.b16 %v181
      %v409 = vpack.c.b16 %v408, %v407
      %410 = vrot.lane.b32.xlu0 %v274, 40
      %v411 = vpop.permute.xlu0 %410
      %412 = vrot.lane.b32.xlu0 %v409, 40
      %v413 = vpop.permute.xlu0 %412
      %vm414 = vcmask 326656
      %v415 = vsel %vm414, %v411, %v413
      %416 = vrot.lane.b32.xlu0 %v214, 104
      %v417 = vpop.permute.xlu0 %416
      %418 = vrot.lane.b32.xlu0 %v215, 104
      %v419 = vpop.permute.xlu0 %418
      %420 = vrot.lane.b32.xlu0 %v216, 104
      %v421 = vpop.permute.xlu0 %420
      %422 = vrot.lane.b32.xlu0 %v217, 104
      %v423 = vpop.permute.xlu0 %422
      %424 = vrot.lane.b32.xlu0 %v218, 104
      %v425 = vpop.permute.xlu0 %424
      %v431 = vsel %vm223, %v415, 0
      %v434 = vsel %vm227, %v425, 0
      %436 = vmatprep.subr.bf16.mxu0 0
      %437 = vmatpush1.bf16.msra.mxu0 %v417
      %438 = vmatprep.subr.bf16.mxu0 0
      %439 = vmatpush1.bf16.msra.mxu0 %v419
      %440 = vmatprep.subr.bf16.mxu0 0
      %441 = vmatpush1.bf16.msra.mxu0 %v421
      %442 = vmatprep.subr.bf16.mxu0 0
      %443 = vmatpush1.bf16.msra.mxu0 %v423
      %444 = vmatprep.subr.bf16.mxu0 0
      %445 = vmatpush1.bf16.msra.mxu0 %v434
      %446 = vmatprep.subr.bf16.mxu0 0
      %447 = vmatpush1.bf16.msra.mxu0 0
      %448 = vmatprep.subr.bf16.mxu0 0
      %449 = vmatpush1.bf16.msra.mxu0 0
      %450 = vmatprep.subr.bf16.mxu0 0
      %451 = vmatpush1.bf16.msra.mxu0 0
      %452 = vmatprep.subr.bf16.mxu0 0
      %453 = vmatpush1.bf16.msra.mxu0 0
      %454 = vmatprep.subr.bf16.mxu0 0
      %455 = vmatpush1.bf16.msra.mxu0 0
      %456 = vmatprep.subr.bf16.mxu0 0
      %457 = vmatpush1.bf16.msra.mxu0 0
      %458 = vmatprep.subr.bf16.mxu0 0
      %459 = vmatpush1.bf16.msra.mxu0 0
      %460 = vmatprep.subr.bf16.mxu0 0
      %461 = vmatpush1.bf16.msra.mxu0 0
      %462 = vmatprep.subr.bf16.mxu0 0
      %463 = vmatpush1.bf16.msra.mxu0 0
      %464 = vmatprep.subr.bf16.mxu0 0
      %465 = vmatpush1.bf16.msra.mxu0 0
      %466 = vmatprep.subr.bf16.mxu0 0
      %467 = vmatpush1.bf16.msra.mxu0 0
      %468 = vmatprep.mubr.bf16.mxu0 0
      %469 = vmatmul.mubr.bf16.gmra.mrb[0].mxu0 %v431
      %v470 = vpop.f32.mrb[0].mxu0
      %v471 = vadd.f32 0.0, %v470
      %v472 = vpop.f32.mrb[0].mxu0
      %v473 = vpop.f32.mrb[0].mxu0
      %v474 = vadd.f32 0.0, %v473
      %v475 = vpop.f32.mrb[0].mxu0
      %476 = vdwg.mxu0
      %479 = vrot.lane.b32.xlu0 %v336, 8
      %v480 = vpop.permute.xlu0 %479
      %481 = vrot.lane.b32.xlu0 %v339, 8
      %v482 = vpop.permute.xlu0 %481
      %487 = vrot.lane.b32.xlu0 %v399, 16
      %v488 = vpop.permute.xlu0 %487
      %489 = vrot.lane.b32.xlu0 %v402, 16
      %v490 = vpop.permute.xlu0 %489
      %495 = vrot.lane.b32.xlu0 %v471, 24
      %v496 = vpop.permute.xlu0 %495
      %497 = vrot.lane.b32.xlu0 %v474, 24
      %v498 = vpop.permute.xlu0 %497
      %vm501 = vcmask 64512
      %v502 = vsel %vm501, %v266, %v480
      %v503 = vsel %vm501, %v269, %v482
      %vm504 = vcmask 130048
      %v505 = vsel %vm504, %v502, %v488
      %v506 = vsel %vm504, %v503, %v490
      %vm507 = vcmask 195584
      %v508 = vsel %vm507, %v505, %v496
      %v509 = vsel %vm507, %v506, %v498
      %v510 = vld [vmem:[%s2] sm:$0x1]
      %v512 = vlaneseq
      %v513 = vshrl.u32 %v512, 7
      %v514 = vsub.s32 0, %v513
      %v515 = vrot.slane %v510, %v514
      %v517 = vadd.f32 %v508, %v515
      %v518 = vadd.f32 %v509, %v515
      %v519 = vmax.f32 %v517, 0.0
      %v520 = vmax.f32 %v518, 0.0
      %v521 = vpack.c.bf16 %v520, %v519
      %v523 = vunpack.c.l.b16 %v521
      %v524 = vunpack.c.h.b16 %v521
      %v525 = vpack.c.b16 %v523, %v523
      %v526 = vpack.c.b16 %v524, %v524
      %vm529 = vcmask 257024
      %530 = vst.msk [vmem:[%s175] sm:$0xf] %vm529, %v525
      %531 = vst.msk [vmem:[%s175 + $0x4] sm:$0xf] %vm529, %v526
      %s532 = smul.u32 2, %s14
      %p533 = scmp.lt.s32.totalorder %s532, 3
      %s534 = scalar_select %p533, %s532, 3
      %s535 = smul.addr %s534, 4
      %s536 = scalar_lea.vmem %s3, %s535
      // Predicated region
      $region33: #{block_forward.4} parent=31 // pred_check
        %p537 = pneg %p100
      $region34: #{block_forward.4} parent=31 // pred_check_branch
        %539 = sbr.rel (%p537) target = $region36
      $region35: #{block_forward.4} parent=31 // pred_region
        %s540 = smul.u32 2, %s14
      $region36: #{block_forward.4} parent=31 // pred_fallthru
        _
    $region32: #{block_forward.4} parent=5 // pred_fallthru
      _
    %p541 = scmp.le.s32.totalorder 2, %s9
    // Predicated region
    $region37: #{block_forward.4} parent=5 // pred_check
      %p542 = pneg %p541
    $region38: #{block_forward.4} parent=5 // pred_check_branch
      %544 = sbr.rel (%p542) target = $region40
    $region39: #{block_forward.4} parent=5 // pred_region
      %s545 = ssub.s32 %s9, 2
      // Predicated region
      $region41: #{block_forward.4} parent=39 // pred_check
        %p546 = pneg %p106
      $region42: #{block_forward.4} parent=39 // pred_check_branch
        %548 = sbr.rel (%p546) target = $region44
      $region43: #{block_forward.4} parent=39 // pred_region
        %s549 = smul.u32 2, %s15
        %p550 = scmp.lt.s32.totalorder %s549, 3
        %s551 = scalar_select %p550, %s549, 3
        %s552 = smul.addr %s551, 4
        %s553 = scalar_lea.vmem %s3, %s552
      $region44: #{block_forward.4} parent=39 // pred_fallthru
        _
    $region40: #{block_forward.4} parent=5 // pred_fallthru
      _
  $region6: #{block_forward.4} parent=0 // loop_footer
    %s13 = sadd.s32 1, %s9
  $region7: #{block_forward.4} parent=0 // loop_footer_branch
    %8 = sbr.rel target = $region3
  $region8: #{block_forward.4} parent=0 // loop_exit
    _

// kernel: block_forward.5
$region0: #{block_forward.5}
  #allocation0 [shape = 'u32[]', space=smem, size = 0x4, offset = 0x4, fixed_abs, tag = 'smem constant byte address 0x4 - core index']
  #allocation1 [shape = 'u32[144,128]{1,0:T(1,128)}', space=vmem, size = 0x12000, scoped, tag = 'internal scratch']
  %s0 = inlined_call_operand.vmem [shape: bf16[32,32], index: 0, kind: input, shape index: {}]
  %s1 = inlined_call_operand.vmem [shape: bf16[32,64], index: 1, kind: input, shape index: {}]
  %s2 = inlined_call_operand.vmem [shape: f32[1,64], index: 2, kind: input, shape index: {}]
  %s3 = inlined_call_operand.vmem [shape: bf16[32,16], index: 3, kind: input, shape index: {}]
  %s4 = inlined_call_operand.vmem [shape: bf16[16,64], index: 4, kind: input, shape index: {}]
  %s5 = inlined_call_operand.vmem [shape: f32[1,64], index: 5, kind: input, shape index: {}]
  %s6 = inlined_call_operand.hbm [shape: f32[32,64], index: 6, kind: output, shape index: {}]
  %s7 = sld [smem:[#allocation0]]
  $region57: #{block_forward.5} parent=0
    _
  %s9 = ssub.s32 1, %s7
  %s10 = scalar_select 0, %s9, %s7
  $region1: #{block_forward.5} parent=0
    #allocation2 [shape = 'u8[16384]{0}', space=vmem, size = 0x4000, scoped, tag = 'output window, operand 0']
    #allocation3 [shape = 's32[2]{0}', space=sflag, size = 0x8, scoped, tag = 'scoped memory for block_forward.5']
    %11 = vsyncpa [#allocation3], 0
    %s12 = scalar_lea.sflag [#allocation3], 1
    %13 = vsyncpa %s12, 0
    loop: start=0, step=1, limit=4
    $region2: #{block_forward.5} parent=1 // loop_pre_header
      _
    $region3: #{block_forward.5} parent=1 // loop_header
      %s15 = sphi 0, %s19
      %p16 = scmp.ge.s32.totalorder %s15, 4
      %s22 = sphi 0, %s34
      %s23 = sphi 0, %s30
      %s24 = sphi 0, %s22
      %s25 = sphi 0, %s23
      %s26 = sphi 0, %s24
      %s27 = sphi 0, %s25
      %s37 = sphi 0, %s39
      %s40 = sphi 0, %s37
      %s41 = sphi 0, %s40
      %s57 = sphi 0, %s41
      %s63 = sphi 0, %s65
      %s66 = sphi 0, %s63
      %s67 = sphi 0, %s66
      %s83 = sphi 0, %s67
      %s89 = sphi 0, %s91
      %s92 = sphi 0, %s89
      %s93 = sphi 0, %s92
      %s109 = sphi 0, %s93
      %s115 = sphi 0, %s117
      %s118 = sphi 0, %s115
      %s119 = sphi 0, %s118
      %s135 = sphi 0, %s119
      %s141 = sphi 0, %s143
      %s144 = sphi 0, %s141
      %s145 = sphi 0, %s144
      %s161 = sphi 0, %s145
      %s167 = sphi 0, %s169
      %s170 = sphi 0, %s167
      %s171 = sphi 0, %s170
      %s187 = sphi 0, %s171
      %s195 = sphi 0, %s197
      %s198 = sphi 0, %s195
      %s199 = sphi 0, %s198
      %s215 = sphi 0, %s199
    $region4: #{block_forward.5} parent=1 // loop_header_branch
      %18 = sbr.rel (%p16) target = $region8
    $region5: #{block_forward.5} parent=1 // loop_body
      %s20 = ssub.s32 %s15, 1
      %s21 = ssub.s32 %s15, 2
      %s28 = sadd.s32 1, %s23
      %p29 = scmp.ge.s32.totalorder %s28, 1
      %s30 = scalar_select %p29, 0, %s28
      %s31 = sadd.s32 1, %s22
      %s32 = scalar_select %p29, %s31, %s22
      %p33 = scmp.ge.s32.totalorder %s32, 2
      %s34 = scalar_select %p33, 0, %s32
      %s35 = ssub.s32 %s22, %s34
      %p36 = scmp.eq.s32.totalorder %s35, 0
      %s38 = sadd.s32 %s37, 1
      %s39 = scalar_select %p36, %s37, %s38
      %p42 = pneg %p36
      %p43 = scmp.eq.s32.totalorder %s15, 1
      %p44 = por %p42, %p43
      %p45 = scmp.ne.s32.totalorder %s37, %s40
      %p46 = scmp.eq.s32.totalorder %s15, 0
      %p47 = por %p45, %p46
      %p48 = scmp.ne.s32.totalorder %s37, %s40
      %p49 = scmp.eq.s32.totalorder %s20, 1
      %p50 = por %p48, %p49
      %p51 = scmp.ne.s32.totalorder %s40, %s41
      %p52 = scmp.eq.s32.totalorder %s20, 0
      %p53 = por %p51, %p52
      %p54 = scmp.ne.s32.totalorder %s40, %s41
      %p55 = scmp.eq.s32.totalorder %s21, 1
      %p56 = por %p54, %p55
      %p58 = scmp.ne.s32.totalorder %s41, %s57
      %p59 = scmp.eq.s32.totalorder %s21, 0
      %p60 = por %p58, %p59
      %s61 = ssub.s32 %s23, %s30
      %p62 = scmp.eq.s32.totalorder %s61, 0
      %s64 = sadd.s32 %s63, 1
      %s65 = scalar_select %p62, %s63, %s64
      %p68 = pneg %p62
      %p69 = scmp.eq.s32.totalorder %s15, 1
      %p70 = por %p68, %p69
      %p71 = scmp.ne.s32.totalorder %s63, %s66
      %p72 = scmp.eq.s32.totalorder %s15, 0
      %p73 = por %p71, %p72
      %p74 = scmp.ne.s32.totalorder %s63, %s66
      %p75 = scmp.eq.s32.totalorder %s20, 1
      %p76 = por %p74, %p75
      %p77 = scmp.ne.s32.totalorder %s66, %s67
      %p78 = scmp.eq.s32.totalorder %s20, 0
      %p79 = por %p77, %p78
      %p80 = scmp.ne.s32.totalorder %s66, %s67
      %p81 = scmp.eq.s32.totalorder %s21, 1
      %p82 = por %p80, %p81
      %p84 = scmp.ne.s32.totalorder %s67, %s83
      %p85 = scmp.eq.s32.totalorder %s21, 0
      %p86 = por %p84, %p85
      %s87 = ssub.s32 %s23, %s30
      %p88 = scmp.eq.s32.totalorder %s87, 0
      %s90 = sadd.s32 %s89, 1
      %s91 = scalar_select %p88, %s89, %s90
      %p94 = pneg %p88
      %p95 = scmp.eq.s32.totalorder %s15, 1
      %p96 = por %p94, %p95
      %p97 = scmp.ne.s32.totalorder %s89, %s92
      %p98 = scmp.eq.s32.totalorder %s15, 0
      %p99 = por %p97, %p98
      %p100 = scmp.ne.s32.totalorder %s89, %s92
      %p101 = scmp.eq.s32.totalorder %s20, 1
      %p102 = por %p100, %p101
      %p103 = scmp.ne.s32.totalorder %s92, %s93
      %p104 = scmp.eq.s32.totalorder %s20, 0
      %p105 = por %p103, %p104
      %p106 = scmp.ne.s32.totalorder %s92, %s93
      %p107 = scmp.eq.s32.totalorder %s21, 1
      %p108 = por %p106, %p107
      %p110 = scmp.ne.s32.totalorder %s93, %s109
      %p111 = scmp.eq.s32.totalorder %s21, 0
      %p112 = por %p110, %p111
      %s113 = ssub.s32 %s22, %s34
      %p114 = scmp.eq.s32.totalorder %s113, 0
      %s116 = sadd.s32 %s115, 1
      %s117 = scalar_select %p114, %s115, %s116
      %p120 = pneg %p114
      %p121 = scmp.eq.s32.totalorder %s15, 1
      %p122 = por %p120, %p121
      %p123 = scmp.ne.s32.totalorder %s115, %s118
      %p124 = scmp.eq.s32.totalorder %s15, 0
      %p125 = por %p123, %p124
      %p126 = scmp.ne.s32.totalorder %s115, %s118
      %p127 = scmp.eq.s32.totalorder %s20, 1
      %p128 = por %p126, %p127
      %p129 = scmp.ne.s32.totalorder %s118, %s119
      %p130 = scmp.eq.s32.totalorder %s20, 0
      %p131 = por %p129, %p130
      %p132 = scmp.ne.s32.totalorder %s118, %s119
      %p133 = scmp.eq.s32.totalorder %s21, 1
      %p134 = por %p132, %p133
      %p136 = scmp.ne.s32.totalorder %s119, %s135
      %p137 = scmp.eq.s32.totalorder %s21, 0
      %p138 = por %p136, %p137
      %s139 = ssub.s32 %s23, %s30
      %p140 = scmp.eq.s32.totalorder %s139, 0
      %s142 = sadd.s32 %s141, 1
      %s143 = scalar_select %p140, %s141, %s142
      %p146 = pneg %p140
      %p147 = scmp.eq.s32.totalorder %s15, 1
      %p148 = por %p146, %p147
      %p149 = scmp.ne.s32.totalorder %s141, %s144
      %p150 = scmp.eq.s32.totalorder %s15, 0
      %p151 = por %p149, %p150
      %p152 = scmp.ne.s32.totalorder %s141, %s144
      %p153 = scmp.eq.s32.totalorder %s20, 1
      %p154 = por %p152, %p153
      %p155 = scmp.ne.s32.totalorder %s144, %s145
      %p156 = scmp.eq.s32.totalorder %s20, 0
      %p157 = por %p155, %p156
      %p158 = scmp.ne.s32.totalorder %s144, %s145
      %p159 = scmp.eq.s32.totalorder %s21, 1
      %p160 = por %p158, %p159
      %p162 = scmp.ne.s32.totalorder %s145, %s161
      %p163 = scmp.eq.s32.totalorder %s21, 0
      %p164 = por %p162, %p163
      %s165 = ssub.s32 %s23, %s30
      %p166 = scmp.eq.s32.totalorder %s165, 0
      %s168 = sadd.s32 %s167, 1
      %s169 = scalar_select %p166, %s167, %s168
      %p172 = pneg %p166
      %p173 = scmp.eq.s32.totalorder %s15, 1
      %p174 = por %p172, %p173
      %p175 = scmp.ne.s32.totalorder %s167, %s170
      %p176 = scmp.eq.s32.totalorder %s15, 0
      %p177 = por %p175, %p176
      %p178 = scmp.ne.s32.totalorder %s167, %s170
      %p179 = scmp.eq.s32.totalorder %s20, 1
      %p180 = por %p178, %p179
      %p181 = scmp.ne.s32.totalorder %s170, %s171
      %p182 = scmp.eq.s32.totalorder %s20, 0
      %p183 = por %p181, %p182
      %p184 = scmp.ne.s32.totalorder %s170, %s171
      %p185 = scmp.eq.s32.totalorder %s21, 1
      %p186 = por %p184, %p185
      %p188 = scmp.ne.s32.totalorder %s171, %s187
      %p189 = scmp.eq.s32.totalorder %s21, 0
      %p190 = por %p188, %p189
      %s191 = ssub.s32 %s22, %s34
      %s192 = ssub.s32 %s23, %s30
      %s193 = sor.u32 %s191, %s192
      %p194 = scmp.eq.s32.totalorder %s193, 0
      %s196 = sadd.s32 %s195, 1
      %s197 = scalar_select %p194, %s195, %s196
      %p200 = pneg %p194
      %p201 = scmp.eq.s32.totalorder %s15, 1
      %p202 = por %p200, %p201
      %p203 = scmp.ne.s32.totalorder %s195, %s198
      %p204 = scmp.eq.s32.totalorder %s15, 0
      %p205 = por %p203, %p204
      %p206 = scmp.ne.s32.totalorder %s195, %s198
      %p207 = scmp.eq.s32.totalorder %s20, 1
      %p208 = por %p206, %p207
      %p209 = scmp.ne.s32.totalorder %s198, %s199
      %p210 = scmp.eq.s32.totalorder %s20, 0
      %p211 = por %p209, %p210
      %p212 = scmp.ne.s32.totalorder %s198, %s199
      %p213 = scmp.eq.s32.totalorder %s21, 1
      %p214 = por %p212, %p213
      %p216 = scmp.ne.s32.totalorder %s199, %s215
      %p217 = scmp.eq.s32.totalorder %s21, 0
      %p218 = por %p216, %p217
      %p219 = scmp.le.s32.totalorder 1, %s15
      %p220 = scmp.lt.s32.totalorder %s15, 3
      %p221 = pnand %p219, %p220
      %p222 = pneg %p221
      // Predicated region
      $region9: #{block_forward.5} parent=5 // pred_check
        _
      $region10: #{block_forward.5} parent=5 // pred_check_branch
        %224 = sbr.rel (%p221) target = $region12
      $region11: #{block_forward.5} parent=5 // pred_region
        %s225 = ssub.s32 %s15, 1
        // Predicated region
        $region13: #{block_forward.5} parent=11 // pred_check
          %p226 = pneg %p79
        $region14: #{block_forward.5} parent=11 // pred_check_branch
          %228 = sbr.rel (%p226) target = $region16
        $region15: #{block_forward.5} parent=11 // pred_region
          %p229 = scmp.lt.s32.totalorder %s25, 0
          %s230 = scalar_select %p229, %s25, 0
          %s231 = smul.addr %s230, 4
          %s232 = scalar_lea.vmem %s1, %s231
        $region16: #{block_forward.5} parent=11 // pred_fallthru
          _
        // Predicated region
        $region17: #{block_forward.5} parent=11 // pred_check
          %p233 = pneg %p105
        $region18: #{block_forward.5} parent=11 // pred_check_branch
          %235 = sbr.rel (%p233) target = $region20
        $region19: #{block_forward.5} parent=11 // pred_region
          %p236 = scmp.lt.s32.totalorder %s25, 0
          %s237 = scalar_select %p236, %s25, 0
          %s238 = scalar_lea.vmem %s2, %s237
        $region20: #{block_forward.5} parent=11 // pred_fallthru
          _
        // Predicated region
        $region21: #{block_forward.5} parent=11 // pred_check
          %p239 = pneg %p157
        $region22: #{block_forward.5} parent=11 // pred_check_branch
          %241 = sbr.rel (%p239) target = $region24
        $region23: #{block_forward.5} parent=11 // pred_region
          %p242 = scmp.lt.s32.totalorder %s25, 0
          %s243 = scalar_select %p242, %s25, 0
          %s244 = smul.addr %s243, 4
          %s245 = scalar_lea.vmem %s4, %s244
        $region24: #{block_forward.5} parent=11 // pred_fallthru
          _
        // Predicated region
        $region25: #{block_forward.5} parent=11 // pred_check
          %p246 = pneg %p183
        $region26: #{block_forward.5} parent=11 // pred_check_branch
          %248 = sbr.rel (%p246) target = $region28
        $region27: #{block_forward.5} parent=11 // pred_region
          %p249 = scmp.lt.s32.totalorder %s25, 0
          %s250 = scalar_select %p249, %s25, 0
          %s251 = scalar_lea.vmem %s5, %s250
        $region28: #{block_forward.5} parent=11 // pred_fallthru
          _
      $region12: #{block_forward.5} parent=5 // pred_fallthru
        _
      %p252 = scmp.lt.s32.totalorder %s15, 2
      // Predicated region
      $region29: #{block_forward.5} parent=5 // pred_check
        %p253 = pneg %p252
      $region30: #{block_forward.5} parent=5 // pred_check_branch
        %255 = sbr.rel (%p253) target = $region32
      $region31: #{block_forward.5} parent=5 // pred_region
        // Predicated region
        $region33: #{block_forward.5} parent=31 // pred_check
          %p256 = pneg %p47
        $region34: #{block_forward.5} parent=31 // pred_check_branch
          %258 = sbr.rel (%p256) target = $region36
        $region35: #{block_forward.5} parent=31 // pred_region
          %s259 = smul.u32 2, %s22
          %p260 = scmp.lt.s32.totalorder %s259, 3
          %s261 = scalar_select %p260, %s259, 3
          %s262 = smul.addr %s261, 4
          %s263 = scalar_lea.vmem %s0, %s262
          %s264 = smul.u32 2, %s22
        $region36: #{block_forward.5} parent=31 // pred_fallthru
          _
        // Predicated region
        $region37: #{block_forward.5} parent=31 // pred_check
          %p265 = pneg %p125
        $region38: #{block_forward.5} parent=31 // pred_check_branch
          %267 = sbr.rel (%p265) target = $region40
        $region39: #{block_forward.5} parent=31 // pred_region
          %s268 = smul.u32 2, %s22
          %p269 = scmp.lt.s32.totalorder %s268, 3
          %s270 = scalar_select %p269, %s268, 3
          %s271 = smul.addr %s270, 4
          %s272 = scalar_lea.vmem %s3, %s271
          %s273 = smul.u32 2, %s22
        $region40: #{block_forward.5} parent=31 // pred_fallthru
          _
      $region32: #{block_forward.5} parent=5 // pred_fallthru
        _
      %p274 = scmp.le.s32.totalorder 1, %s15
      %p275 = scmp.lt.s32.totalorder %s15, 3
      %p276 = pnand %p274, %p275
      %p277 = pneg %p276
      // Predicated region
      $region41: #{block_forward.5} parent=5 // pred_check
        _
      $region42: #{block_forward.5} parent=5 // pred_check_branch
        %279 = sbr.rel (%p276) target = $region44
      $region43: #{block_forward.5} parent=5 // pred_region
        %s280 = ssub.s32 %s15, 1
        %s281 = smul.u32 2, %s24
        %p282 = scmp.lt.s32.totalorder %s281, 3
        %s283 = scalar_select %p282, %s281, 3
        %s284 = smul.addr %s283, 4
        %s285 = scalar_lea.vmem %s0, %s284
        %p286 = pneg %p53
        %p287 = pneg %p50
        %p288 = scmp.lt.s32.totalorder %s25, 0
        %s289 = scalar_select %p288, %s25, 0
        %s290 = smul.addr %s289, 4
        %s291 = scalar_lea.vmem %s1, %s290
        %p292 = pneg %p79
        %p293 = pneg %p76
        %p294 = scmp.lt.s32.totalorder %s25, 0
        %s295 = scalar_select %p294, %s25, 0
        %s296 = scalar_lea.vmem %s2, %s295
        %p297 = pneg %p105
        %p298 = pneg %p102
        %s299 = smul.u32 2, %s24
        %p300 = scmp.lt.s32.totalorder %s299, 3
        %s301 = scalar_select %p300, %s299, 3
        %s302 = smul.addr %s301, 4
        %s303 = scalar_lea.vmem %s3, %s302
        %p304 = pneg %p131
        %p305 = pneg %p128
        %p306 = scmp.lt.s32.totalorder %s25, 0
        %s307 = scalar_select %p306, %s25, 0
        %s308 = smul.addr %s307, 4
        %s309 = scalar_lea.vmem %s4, %s308
        %p310 = pneg %p157
        %p311 = pneg %p154
        %p312 = scmp.lt.s32.totalorder %s25, 0
        %s313 = scalar_select %p312, %s25, 0
        %s314 = scalar_lea.vmem %s5, %s313
        %p315 = pneg %p183
        %p316 = pneg %p180
        %p317 = pneg %p211
        %p318 = pneg %p208
        %s319 = sand.u32 %s198, 1
        %s320 = scalar_lea.sflag [#allocation3], %s319
        %s321 = sand.u32 %s198, 1
        %s322 = smul.addr %s321, 16
        %s323 = scalar_lea.vmem [#allocation2], %s322
        %s324 = smul.u32 2, %s24
        %p325 = scmp.lt.s32.totalorder %s324, 3
        %s326 = scalar_select %p325, %s324, 3
        %s327 = smul.addr %s326, 4
        %s328 = scalar_lea.vmem %s0, %s327
        %s329 = smul.u32 2, %s24
        %p330 = scmp.lt.s32.totalorder %s25, 0
        %s331 = scalar_select %p330, %s25, 0
        %s332 = smul.addr %s331, 4
        %s333 = scalar_lea.vmem %s1, %s332
        %p334 = scmp.lt.s32.totalorder %s25, 0
        %s335 = scalar_select %p334, %s25, 0
        %s336 = scalar_lea.vmem %s2, %s335
        %s337 = smul.u32 2, %s24
        %p338 = scmp.lt.s32.totalorder %s337, 3
        %s339 = scalar_select %p338, %s337, 3
        %s340 = smul.addr %s339, 4
        %s341 = scalar_lea.vmem %s3, %s340
        %s342 = smul.u32 2, %s24
        %p343 = scmp.lt.s32.totalorder %s25, 0
        %s344 = scalar_select %p343, %s25, 0
        %s345 = smul.addr %s344, 4
        %s346 = scalar_lea.vmem %s4, %s345
        %p347 = scmp.lt.s32.totalorder %s25, 0
        %s348 = scalar_select %p347, %s25, 0
        %s349 = scalar_lea.vmem %s5, %s348
        %s350 = smul.u32 2, %s24
        %v352 = vld [vmem:[%s328] sm:$0xf]
        %v353 = vld [vmem:[%s328 + $0x4] sm:$0xf]
        %v354 = vld [vmem:[%s333] sm:$0xf]
        %v355 = vld [vmem:[%s333 + $0x4] sm:$0xf]
        %v356 = vld [vmem:[%s333 + $0x8] sm:$0xf]
        %v357 = vld [vmem:[%s333 + $0xc] sm:$0xf]
        %v358 = vld [vmem:[%s336] sm:$0x1]
        %v360 = vlaneseq
        %v361 = vshrl.u32 %v360, 7
        %v362 = vsub.s32 0, %v361
        %v363 = vrot.slane %v358, %v362
        %v367 = vunpack.c.l.b16 %v352
        %v368 = vunpack.c.l.b16 %v353
        %v369 = vpack.c.b16 %v368, %v367
        %v374 = vunpack.c.l.b16 %v354
        %v375 = vunpack.c.l.b16 %v355
        %v376 = vunpack.c.l.b16 %v356
        %v377 = vunpack.c.l.b16 %v357
        %v378 = vpack.c.b16 %v375, %v374
        %v379 = vpack.c.b16 %v377, %v376
        %vm382 = vcmask 261120
        %v384 = vsel %vm382, %v369, 0
        %386 = vmatprep.subr.bf16.mxu0 0
        %387 = vmatpush1.bf16.msra.mxu0 %v378
        %388 = vmatprep.subr.bf16.mxu0 0
        %389 = vmatpush1.bf16.msra.mxu0 %v379
        %390 = vmatprep.subr.bf16.mxu0 0
        %391 = vmatpush1.bf16.msra.mxu0 0
        %392 = vmatprep.subr.bf16.mxu0 0
        %393 = vmatpush1.bf16.msra.mxu0 0
        %394 = vmatprep.subr.bf16.mxu0 0
        %395 = vmatpush1.bf16.msra.mxu0 0
        %396 = vmatprep.subr.bf16.mxu0 0
        %397 = vmatpush1.bf16.msra.mxu0 0
        %398 = vmatprep.subr.bf16.mxu0 0
        %399 = vmatpush1.bf16.msra.mxu0 0
        %400 = vmatprep.subr.bf16.mxu0 0
        %401 = vmatpush1.bf16.msra.mxu0 0
        %402 = vmatprep.subr.bf16.mxu0 0
        %403 = vmatpush1.bf16.msra.mxu0 0
        %404 = vmatprep.subr.bf16.mxu0 0
        %405 = vmatpush1.bf16.msra.mxu0 0
        %406 = vmatprep.subr.bf16.mxu0 0
        %407 = vmatpush1.bf16.msra.mxu0 0
        %408 = vmatprep.subr.bf16.mxu0 0
        %409 = vmatpush1.bf16.msra.mxu0 0
        %410 = vmatprep.subr.bf16.mxu0 0
        %411 = vmatpush1.bf16.msra.mxu0 0
        %412 = vmatprep.subr.bf16.mxu0 0
        %413 = vmatpush1.bf16.msra.mxu0 0
        %414 = vmatprep.subr.bf16.mxu0 0
        %415 = vmatpush1.bf16.msra.mxu0 0
        %416 = vmatprep.subr.bf16.mxu0 0
        %417 = vmatpush1.bf16.msra.mxu0 0
        %418 = vmatprep.mubr.bf16.mxu0 0
        %419 = vmatmul.mubr.bf16.gmra.mrb[0].mxu0 %v384
        %v420 = vpop.f32.mrb[0].mxu0
        %v421 = vadd.f32 %v363, %v420
        %v422 = vpop.f32.mrb[0].mxu0
        %v423 = vpop.f32.mrb[0].mxu0
        %v424 = vadd.f32 %v363, %v423
        %v425 = vpop.f32.mrb[0].mxu0
        %426 = vdwg.mxu0
        %v427 = vld [vmem:[%s341] sm:$0xf]
        %v428 = vld [vmem:[%s341 + $0x4] sm:$0xf]
        %v429 = vld [vmem:[%s346] sm:$0xf]
        %v430 = vld [vmem:[%s346 + $0x4] sm:$0xf]
        %v433 = vunpack.c.l.b16 %v427
        %v434 = vunpack.c.l.b16 %v428
        %v435 = vpack.c.b16 %v434, %v433
        %v438 = vunpack.c.l.b16 %v429
        %v439 = vunpack.c.l.b16 %v430
        %v440 = vpack.c.b16 %v439, %v438
        %vm442 = vcmask 130048
        %v444 = vsel %vm442, %v435, 0
        %446 = vmatprep.subr.bf16.mxu0 0
        %447 = vmatpush1.bf16.msra.mxu0 %v440
        %448 = vmatprep.subr.bf16.mxu0 0
        %449 = vmatpush1.bf16.msra.mxu0 0
        %450 = vmatprep.subr.bf16.mxu0 0
        %451 = vmatpush1.bf16.msra.mxu0 0
        %452 = vmatprep.subr.bf16.mxu0 0
        %453 = vmatpush1.bf16.msra.mxu0 0
        %454 = vmatprep.subr.bf16.mxu0 0
        %455 = vmatpush1.bf16.msra.mxu0 0
        %456 = vmatprep.subr.bf16.mxu0 0
        %457 = vmatpush1.bf16.msra.mxu0 0
        %458 = vmatprep.subr.bf16.mxu0 0
        %459 = vmatpush1.bf16.msra.mxu0 0
        %460 = vmatprep.subr.bf16.mxu0 0
        %461 = vmatpush1.bf16.msra.mxu0 0
        %462 = vmatprep.subr.bf16.mxu0 0
        %463 = vmatpush1.bf16.msra.mxu0 0
        %464 = vmatprep.subr.bf16.mxu0 0
        %465 = vmatpush1.bf16.msra.mxu0 0
        %466 = vmatprep.subr.bf16.mxu0 0
        %467 = vmatpush1.bf16.msra.mxu0 0
        %468 = vmatprep.subr.bf16.mxu0 0
        %469 = vmatpush1.bf16.msra.mxu0 0
        %470 = vmatprep.subr.bf16.mxu0 0
        %471 = vmatpush1.bf16.msra.mxu0 0
        %472 = vmatprep.subr.bf16.mxu0 0
        %473 = vmatpush1.bf16.msra.mxu0 0
        %474 = vmatprep.subr.bf16.mxu0 0
        %475 = vmatpush1.bf16.msra.mxu0 0
        %476 = vmatprep.subr.bf16.mxu0 0
        %477 = vmatpush1.bf16.msra.mxu0 0
        %478 = vmatprep.mubr.bf16.mxu0 0
        %479 = vmatmul.mubr.bf16.gmra.mrb[0].mxu0 %v444
        %v480 = vpop.f32.mrb[0].mxu0
        %v481 = vadd.f32 0.0, %v480
        %v482 = vpop.f32.mrb[0].mxu0
        %v483 = vpop.f32.mrb[0].mxu0
        %v484 = vadd.f32 0.0, %v483
        %v485 = vpop.f32.mrb[0].mxu0
        %486 = vdwg.mxu0
        %v487 = vadd.f32 %v421, %v481
        %v488 = vadd.f32 %v424, %v484
        %v489 = vld [vmem:[%s349] sm:$0x1]
        %v491 = vlaneseq
        %v492 = vshrl.u32 %v491, 7
        %v493 = vsub.s32 0, %v492
        %v494 = vrot.slane %v489, %v493
        %v496 = vadd.f32 %v487, %v494
        %v497 = vadd.f32 %v488, %v494
        %v498 = vmax.f32 %v496, 0.0
        %v499 = vmax.f32 %v497, 0.0
        %vm500 = vcmask 523264
        %501 = vst.msk [vmem:[%s323] sm:$0xff] %vm500, %v498
        %502 = vst.msk [vmem:[%s323 + $0x8] sm:$0xff] %vm500, %v499
        %s503 = sand.u32 %s198, 1
        %s504 = scalar_lea.sflag [#allocation3], %s503
        %s505 = sand.u32 %s198, 1
        %s506 = smul.addr %s505, 16
        %s507 = scalar_lea.vmem [#allocation2], %s506
        // Predicated region
        $region45: #{block_forward.5} parent=43 // pred_check
          %p508 = pneg %p208
        $region46: #{block_forward.5} parent=43 // pred_check_branch
          %510 = sbr.rel (%p508) target = $region48
        $region47: #{block_forward.5} parent=43 // pred_region
          %s511 = smul.u32 2, %s24
          %s513 = ssub.s32 256, 256
          %514 = vsyncadd %s504, %s513
          %s515 = sadd.s32 %s25, %s511
          %s516 = smul.addr %s515, 128
          %s517 = scalar_lea.hbm %s6, %s516
          %s518 = sshll.u32 %s507, 4
          %s519 = int_to_ptr.vmem [resolvable:$true] %s518
          %524 = dma.vmem_to_hbm [thread:$0]  %s519, 256, %s517, %s504, 128, 128, 8
        $region48: #{block_forward.5} parent=43 // pred_fallthru
          _
      $region44: #{block_forward.5} parent=5 // pred_fallthru
        _
      %p525 = scmp.le.s32.totalorder 2, %s15
      // Predicated region
      $region49: #{block_forward.5} parent=5 // pred_check
        %p526 = pneg %p525
      $region50: #{block_forward.5} parent=5 // pred_check_branch
        %528 = sbr.rel (%p526) target = $region52
      $region51: #{block_forward.5} parent=5 // pred_region
        %s529 = ssub.s32 %s15, 2
        // Predicated region
        $region53: #{block_forward.5} parent=51 // pred_check
          %p530 = pneg %p214
        $region54: #{block_forward.5} parent=51 // pred_check_branch
          %532 = sbr.rel (%p530) target = $region56
        $region55: #{block_forward.5} parent=51 // pred_region
          %s533 = sand.u32 %s199, 1
          %s534 = scalar_lea.sflag [#allocation3], %s533
          %s535 = sand.u32 %s199, 1
          %s536 = smul.addr %s535, 16
          %s537 = scalar_lea.vmem [#allocation2], %s536
          %538 = dma.done %s534, 256
        $region56: #{block_forward.5} parent=51 // pred_fallthru
          _
      $region52: #{block_forward.5} parent=5 // pred_fallthru
        _
    $region6: #{block_forward.5} parent=1 // loop_footer
      %s19 = sadd.s32 1, %s15
    $region7: #{block_forward.5} parent=1 // loop_footer_branch
      %14 = sbr.rel target = $region3
    $region8: #{block_forward.5} parent=1 // loop_exit
      _
    %539 = vsyncpa [#allocation3], 1
    %s540 = scalar_lea.sflag [#allocation3], 1
    %541 = vsyncpa %s540, 1

</llo_original>
